<compile_context>
chip_gen: v5e
topology: v5e:2x2
jax: 0.10.0
libtpu: 0.0.40
codegen_flags: <defaults>
</compile_context>

<pallas_src>
import functools

import jax
import jax.numpy as jnp
import numpy as np
from jax.experimental import pallas as pl
from jax.experimental.pallas import tpu as pltpu


def _act(z, leak):
    """ReLU (leak==0) / Identity (leak==-1) / LeakyReLU, selected statically."""
    if leak == 0:
        return jnp.maximum(z, 0.0)
    if leak == -1:
        return z
    return jnp.where(z > 0, z, leak * z)


def _reslayer_kernel(x_ref, bmask_ref, cmask_ref,
                     wcol1_ref, g1_ref, b1_ref,
                     wcol2_ref, g2_ref, b2_ref,
                     out_ref, *, N, C, H, W, eps, leak):
    """Fused ResLayer forward on a lane-dense (N*C, H*W) slab.

    x_ref     : (N*C, H*W) f32 VMEM  -- input slab, row r = n*C + c
    bmask_ref : (4, N*C, H*W) f32    -- {w==0, w==W-1, h==0, h==H-1} masks
    cmask_ref : (C, N*C, 1) f32      -- cmask[c, r] = 1.0 iff r % C == c
    wcol*_ref : (C*9, N*C, 1) f32    -- wcol[co*9+kh*3+kw, n*C+ci] = w[co,ci,kh,kw]
    g*/b*_ref : (N*C, 1) f32         -- BN affine, row n*C + c gets gamma[c]/beta[c]
    out_ref   : (N*C, H*W) f32 VMEM  -- output slab, row r = n*C + c
    """
    R, HW = N * C, H * W
    x = x_ref[...]

    # Boundary masks, computed once and reused by both convolutions.
    w_first = bmask_ref[0] > 0.5
    w_last = bmask_ref[1] > 0.5
    h_first = bmask_ref[2] > 0.5
    h_last = bmask_ref[3] > 0.5

    def fetch(a, d, axis):
        """out[..., i, ...] = a[..., (i + d) % L, ...] along `axis` (circular)."""
        L = a.shape[axis]
        s = (-d) % L
        return a if s == 0 else pltpu.roll(a, s, axis=axis)

    def tap_shifts(a):
        """The 9 reflect-padded 3x3 tap views of the slab, ordered t = kh*3+kw."""
        right = fetch(a, +1, 1)                      # value at (h, w+1)
        left = fetch(a, -1, 1)                       # value at (h, w-1)
        by_dw = {
            -1: jnp.where(w_first, right, left),     # reflect at w == 0
            0: a,
            +1: jnp.where(w_last, left, right),      # reflect at w == W-1
        }
        taps = []
        for kh in range(3):
            dh = kh - 1
            for kw in range(3):
                y = by_dw[kw - 1]
                if dh == 0:
                    taps.append(y)
                    continue
                down = fetch(y, +W, 1)               # value at (h+1, w)
                up = fetch(y, -W, 1)                 # value at (h-1, w)
                if dh == +1:
                    taps.append(jnp.where(h_last, up, down))
                else:
                    taps.append(jnp.where(h_first, down, up))
        return taps

    def conv3x3(a, wcol_ref):
        """3x3 reflect-padded conv on the slab (rows n*C+ci -> rows n*C+co)."""
        taps = tap_shifts(a)
        out = jnp.zeros((R, HW), jnp.float32)
        for co in range(C):
            # Per-tap MAC over all (n, ci) rows at once (VPU, full lanes).
            acc = wcol_ref[co * 9] * taps[0]
            for t in range(1, 9):
                acc = acc + wcol_ref[co * 9 + t] * taps[t]
            # Reduce over the C input-channel rows of each batch group and land
            # the result on rows n*C + co, via sublane rolls + channel mask.
            red = None
            for ci in range(C):
                s = (co - ci) % R
                term = acc if s == 0 else pltpu.roll(acc, s, axis=0)
                red = term if red is None else red + term
            out = out + cmask_ref[co] * red
        return out

    def batchnorm(a, g_ref, b_ref):
        """Training-mode BatchNorm2d over the slab (two-pass centered variance)."""
        inv_cnt = 1.0 / float(N * HW)
        row_sum = jnp.sum(a, axis=1, keepdims=True)              # (R, 1)
        chan_sum = row_sum
        for k in range(1, N):                                    # combine batches
            chan_sum = chan_sum + pltpu.roll(row_sum, (-k * C) % R, axis=0)
        mean = chan_sum * inv_cnt                                # per-channel, per-row
        centered = a - mean
        row_sq = jnp.sum(centered * centered, axis=1, keepdims=True)
        chan_sq = row_sq
        for k in range(1, N):
            chan_sq = chan_sq + pltpu.roll(row_sq, (-k * C) % R, axis=0)
        scale = jax.lax.rsqrt(chan_sq * inv_cnt + eps) * g_ref[...]   # EUP rsqrt
        return centered * scale + b_ref[...]

    # conv1 -> BN1 -> ReLU / LeakyReLU(leak)
    z1 = _act(batchnorm(conv3x3(x, wcol1_ref), g1_ref, b1_ref), leak)
    # conv2 -> BN2  (the module's second ConvBNReLU uses leak=-1 -> Identity)
    z2 = batchnorm(conv3x3(z1, wcol2_ref), g2_ref, b2_ref)
    # residual add + final ReLU / LeakyReLU, stored as one full-lane slab.
    out_ref[...] = _act(z2 + x, leak)


def reslayer_forward(x_nchw, params, *, eps=1e-5, leak=0.0):
    """JAX wrapper: lane-dense repack of params, one pallas_call, free reshape."""
    N, C, H, W = x_nchw.shape
    assert H >= 2 and W >= 2, "reflection padding requires H >= 2 and W >= 2"
    R, HW = N * C, H * W

    x2d = x_nchw.astype(jnp.float32).reshape(R, HW)      # free row-major reshape

    def weight_cols(w):
        # (Cout, Cin, 3, 3) -> (Cout*9, N*C, 1):
        #   wcol[co*9 + kh*3 + kw, n*C + ci, 0] = w[co, ci, kh, kw]
        w9 = w.astype(jnp.float32).reshape(C, C, 9)          # (co, ci, t)
        wt = jnp.transpose(w9, (0, 2, 1))                    # (co, t, ci)
        wb = jnp.broadcast_to(wt[:, :, None, :], (C, 9, N, C))
        return wb.reshape(C * 9, R, 1)

    def affine_col(v):
        # (C,) -> (N*C, 1), row n*C + c gets v[c]
        return jnp.broadcast_to(v.astype(jnp.float32)[None, :], (N, C)).reshape(R, 1)

    # Boundary masks for the roll-based reflect padding (shape constants).
    col_idx = np.tile(np.arange(W), H)        # w of flattened spatial index
    row_idx = np.repeat(np.arange(H), W)      # h of flattened spatial index

    def full(m):
        return np.broadcast_to(m.astype(np.float32)[None, :], (R, HW))

    bmask = jnp.asarray(np.stack([full(col_idx == 0), full(col_idx == W - 1),
                                  full(row_idx == 0), full(row_idx == H - 1)]))
    # Channel-placement masks: cmask[c, r] = 1 iff row r holds channel c.
    cmask = jnp.asarray(
        (np.arange(C)[:, None] == (np.arange(R) % C)[None, :])
        .astype(np.float32)[:, :, None])

    kernel = functools.partial(_reslayer_kernel, N=N, C=C, H=H, W=W,
                               eps=eps, leak=leak)
    vmem = pl.BlockSpec(memory_space=pltpu.MemorySpace.VMEM)
    out2d = pl.pallas_call(
        kernel,
        out_shape=jax.ShapeDtypeStruct((R, HW), jnp.float32),
        in_specs=[vmem] * 9,
        out_specs=vmem,
    )(x2d, bmask, cmask,
      weight_cols(params["w1"]), affine_col(params["g1"]), affine_col(params["b1"]),
      weight_cols(params["w2"]), affine_col(params["g2"]), affine_col(params["b2"]))

    # Row order is n*C + c, so this reshape back to NCHW is free.
    return out2d.reshape(N, C, H, W)


def _reference_numpy(x, params, eps=1e-5, leak=0.0):
    """float64 NumPy reference of ResLayer.forward (defaults: batch norm,
    DWS=False, groups=1, dilation=1, kernel=3, reflection padding)."""
    x = np.asarray(x, dtype=np.float64)
    w1 = np.asarray(params["w1"], np.float64)
    w2 = np.asarray(params["w2"], np.float64)
    g1 = np.asarray(params["g1"], np.float64)
    b1 = np.asarray(params["b1"], np.float64)
    g2 = np.asarray(params["g2"], np.float64)
    b2 = np.asarray(params["b2"], np.float64)
    N, C, H, W = x.shape

    def rpad(t):
        t = np.concatenate([t[:, :, 1:2, :], t, t[:, :, -2:-1, :]], axis=2)
        t = np.concatenate([t[:, :, :, 1:2], t, t[:, :, :, -2:-1]], axis=3)
        return t

    def conv(tp, w):
        out = np.zeros((N, C, H, W), dtype=np.float64)
        for co in range(C):
            for ci in range(C):
                for kh in range(3):
                    for kw in range(3):
                        out[:, co] += w[co, ci, kh, kw] * tp[:, ci, kh:kh + H, kw:kw + W]
        return out

    def bn(t, g, b):
        m = t.mean(axis=(0, 2, 3), keepdims=True)
        v = t.var(axis=(0, 2, 3), keepdims=True)             # biased, like torch train()
        return (t - m) / np.sqrt(v + eps) * g.reshape(1, C, 1, 1) + b.reshape(1, C, 1, 1)

    def act(t, lk):
        if lk == 0:
            return np.maximum(t, 0.0)
        if lk == -1:
            return t
        return np.where(t > 0, t, lk * t)

    z1 = act(bn(conv(rpad(x), w1), g1, b1), leak)
    z2 = bn(conv(rpad(z1), w2), g2, b2)                       # conv2 activation: Identity
    return act(z2 + x, leak)


if __name__ == "__main__":
    N, C, H, W = 2, 4, 16, 16

    key = jax.random.PRNGKey(0)
    kx, kw1, kg1, kb1, kw2, kg2, kb2 = jax.random.split(key, 7)
    x = jax.random.normal(kx, (N, C, H, W), jnp.float32)
    params = {
        "w1": 0.3 * jax.random.normal(kw1, (C, C, 3, 3), jnp.float32),
        "g1": 1.0 + 0.1 * jax.random.normal(kg1, (C,), jnp.float32),
        "b1": 0.1 * jax.random.normal(kb1, (C,), jnp.float32),
        "w2": 0.3 * jax.random.normal(kw2, (C, C, 3, 3), jnp.float32),
        "g2": 1.0 + 0.1 * jax.random.normal(kg2, (C,), jnp.float32),
        "b2": 0.1 * jax.random.normal(kb2, (C,), jnp.float32),
    }

    out = reslayer_forward(x, params, leak=0.0)
    out = jax.block_until_ready(out)
    assert out.shape == (N, C, H, W), out.shape

    ref = _reference_numpy(x, params, leak=0.0)
    np.testing.assert_allclose(np.asarray(out), ref, rtol=2e-2, atol=2e-2)

    print("KERNEL_OK")
</pallas_src>

<mosaic_0001>
module attributes {stable_mosaic.version = 11 : i64} {
  func.func @_reslayer_kernel(%arg0: memref<8x256xf32, #tpu.memory_space<vmem>>, %arg1: memref<4x8x256xf32, #tpu.memory_space<vmem>>, %arg2: memref<4x8x1xf32, #tpu.memory_space<vmem>>, %arg3: memref<36x8x1xf32, #tpu.memory_space<vmem>>, %arg4: memref<8x1xf32, #tpu.memory_space<vmem>>, %arg5: memref<8x1xf32, #tpu.memory_space<vmem>>, %arg6: memref<36x8x1xf32, #tpu.memory_space<vmem>>, %arg7: memref<8x1xf32, #tpu.memory_space<vmem>>, %arg8: memref<8x1xf32, #tpu.memory_space<vmem>>, %arg9: memref<8x256xf32, #tpu.memory_space<vmem>>) attributes {dimension_semantics = [], scalar_prefetch = 0 : i64, scratch_operands = 0 : i64, tpu.core_type = #tpu.core_type<tc>} {
    %c0 = arith.constant 0 : index
    %c0_0 = arith.constant 0 : index
    %0 = vector.load %arg0[%c0, %c0_0] : memref<8x256xf32, #tpu.memory_space<vmem>>, vector<8x256xf32>
    %c0_1 = arith.constant 0 : index
    %c0_2 = arith.constant 0 : index
    %c0_3 = arith.constant 0 : index
    %1 = vector.load %arg1[%c0_1, %c0_2, %c0_3] : memref<4x8x256xf32, #tpu.memory_space<vmem>>, vector<1x8x256xf32>
    %2 = vector.shape_cast %1 : vector<1x8x256xf32> to vector<8x256xf32>
    %cst = arith.constant 5.000000e-01 : f32
    %3 = vector.broadcast %cst : f32 to vector<8x256xf32>
    %4 = arith.cmpf ogt, %2, %3 : vector<8x256xf32>
    %c1 = arith.constant 1 : index
    %c0_4 = arith.constant 0 : index
    %c0_5 = arith.constant 0 : index
    %5 = vector.load %arg1[%c1, %c0_4, %c0_5] : memref<4x8x256xf32, #tpu.memory_space<vmem>>, vector<1x8x256xf32>
    %6 = vector.shape_cast %5 : vector<1x8x256xf32> to vector<8x256xf32>
    %cst_6 = arith.constant 5.000000e-01 : f32
    %7 = vector.broadcast %cst_6 : f32 to vector<8x256xf32>
    %8 = arith.cmpf ogt, %6, %7 : vector<8x256xf32>
    %c2 = arith.constant 2 : index
    %c0_7 = arith.constant 0 : index
    %c0_8 = arith.constant 0 : index
    %9 = vector.load %arg1[%c2, %c0_7, %c0_8] : memref<4x8x256xf32, #tpu.memory_space<vmem>>, vector<1x8x256xf32>
    %10 = vector.shape_cast %9 : vector<1x8x256xf32> to vector<8x256xf32>
    %cst_9 = arith.constant 5.000000e-01 : f32
    %11 = vector.broadcast %cst_9 : f32 to vector<8x256xf32>
    %12 = arith.cmpf ogt, %10, %11 : vector<8x256xf32>
    %c3 = arith.constant 3 : index
    %c0_10 = arith.constant 0 : index
    %c0_11 = arith.constant 0 : index
    %13 = vector.load %arg1[%c3, %c0_10, %c0_11] : memref<4x8x256xf32, #tpu.memory_space<vmem>>, vector<1x8x256xf32>
    %14 = vector.shape_cast %13 : vector<1x8x256xf32> to vector<8x256xf32>
    %cst_12 = arith.constant 5.000000e-01 : f32
    %15 = vector.broadcast %cst_12 : f32 to vector<8x256xf32>
    %16 = arith.cmpf ogt, %14, %15 : vector<8x256xf32>
    %c255_i32 = arith.constant 255 : i32
    %17 = tpu.dynamic_rotate %0 by %c255_i32 dim 1 : vector<8x256xf32>, i32 -> vector<8x256xf32>
    %c1_i32 = arith.constant 1 : i32
    %18 = tpu.dynamic_rotate %0 by %c1_i32 dim 1 : vector<8x256xf32>, i32 -> vector<8x256xf32>
    %19 = arith.select %4, %17, %18 : vector<8x256xi1>, vector<8x256xf32>
    %20 = arith.select %8, %18, %17 : vector<8x256xi1>, vector<8x256xf32>
    %c240_i32 = arith.constant 240 : i32
    %21 = tpu.dynamic_rotate %19 by %c240_i32 dim 1 : vector<8x256xf32>, i32 -> vector<8x256xf32>
    %c16_i32 = arith.constant 16 : i32
    %22 = tpu.dynamic_rotate %19 by %c16_i32 dim 1 : vector<8x256xf32>, i32 -> vector<8x256xf32>
    %23 = arith.select %12, %21, %22 : vector<8x256xi1>, vector<8x256xf32>
    %c240_i32_13 = arith.constant 240 : i32
    %24 = tpu.dynamic_rotate %0 by %c240_i32_13 dim 1 : vector<8x256xf32>, i32 -> vector<8x256xf32>
    %c16_i32_14 = arith.constant 16 : i32
    %25 = tpu.dynamic_rotate %0 by %c16_i32_14 dim 1 : vector<8x256xf32>, i32 -> vector<8x256xf32>
    %26 = arith.select %12, %24, %25 : vector<8x256xi1>, vector<8x256xf32>
    %c240_i32_15 = arith.constant 240 : i32
    %27 = tpu.dynamic_rotate %20 by %c240_i32_15 dim 1 : vector<8x256xf32>, i32 -> vector<8x256xf32>
    %c16_i32_16 = arith.constant 16 : i32
    %28 = tpu.dynamic_rotate %20 by %c16_i32_16 dim 1 : vector<8x256xf32>, i32 -> vector<8x256xf32>
    %29 = arith.select %12, %27, %28 : vector<8x256xi1>, vector<8x256xf32>
    %c240_i32_17 = arith.constant 240 : i32
    %30 = tpu.dynamic_rotate %19 by %c240_i32_17 dim 1 : vector<8x256xf32>, i32 -> vector<8x256xf32>
    %c16_i32_18 = arith.constant 16 : i32
    %31 = tpu.dynamic_rotate %19 by %c16_i32_18 dim 1 : vector<8x256xf32>, i32 -> vector<8x256xf32>
    %32 = arith.select %16, %31, %30 : vector<8x256xi1>, vector<8x256xf32>
    %c240_i32_19 = arith.constant 240 : i32
    %33 = tpu.dynamic_rotate %0 by %c240_i32_19 dim 1 : vector<8x256xf32>, i32 -> vector<8x256xf32>
    %c16_i32_20 = arith.constant 16 : i32
    %34 = tpu.dynamic_rotate %0 by %c16_i32_20 dim 1 : vector<8x256xf32>, i32 -> vector<8x256xf32>
    %35 = arith.select %16, %34, %33 : vector<8x256xi1>, vector<8x256xf32>
    %c240_i32_21 = arith.constant 240 : i32
    %36 = tpu.dynamic_rotate %20 by %c240_i32_21 dim 1 : vector<8x256xf32>, i32 -> vector<8x256xf32>
    %c16_i32_22 = arith.constant 16 : i32
    %37 = tpu.dynamic_rotate %20 by %c16_i32_22 dim 1 : vector<8x256xf32>, i32 -> vector<8x256xf32>
    %38 = arith.select %16, %37, %36 : vector<8x256xi1>, vector<8x256xf32>
    %cst_23 = arith.constant 0.000000e+00 : f32
    %39 = vector.broadcast %cst_23 : f32 to vector<8x256xf32>
    %c0_24 = arith.constant 0 : index
    %c0_25 = arith.constant 0 : index
    %c0_26 = arith.constant 0 : index
    %40 = vector.load %arg3[%c0_24, %c0_25, %c0_26] : memref<36x8x1xf32, #tpu.memory_space<vmem>>, vector<1x8x1xf32>
    %41 = vector.shape_cast %40 : vector<1x8x1xf32> to vector<8x1xf32>
    %42 = vector.broadcast %41 : vector<8x1xf32> to vector<8x256xf32>
    %43 = arith.mulf %42, %23 : vector<8x256xf32>
    %c1_27 = arith.constant 1 : index
    %c0_28 = arith.constant 0 : index
    %c0_29 = arith.constant 0 : index
    %44 = vector.load %arg3[%c1_27, %c0_28, %c0_29] : memref<36x8x1xf32, #tpu.memory_space<vmem>>, vector<1x8x1xf32>
    %45 = vector.shape_cast %44 : vector<1x8x1xf32> to vector<8x1xf32>
    %46 = vector.broadcast %45 : vector<8x1xf32> to vector<8x256xf32>
    %47 = arith.mulf %46, %26 : vector<8x256xf32>
    %48 = arith.addf %43, %47 : vector<8x256xf32>
    %c2_30 = arith.constant 2 : index
    %c0_31 = arith.constant 0 : index
    %c0_32 = arith.constant 0 : index
    %49 = vector.load %arg3[%c2_30, %c0_31, %c0_32] : memref<36x8x1xf32, #tpu.memory_space<vmem>>, vector<1x8x1xf32>
    %50 = vector.shape_cast %49 : vector<1x8x1xf32> to vector<8x1xf32>
    %51 = vector.broadcast %50 : vector<8x1xf32> to vector<8x256xf32>
    %52 = arith.mulf %51, %29 : vector<8x256xf32>
    %53 = arith.addf %48, %52 : vector<8x256xf32>
    %c3_33 = arith.constant 3 : index
    %c0_34 = arith.constant 0 : index
    %c0_35 = arith.constant 0 : index
    %54 = vector.load %arg3[%c3_33, %c0_34, %c0_35] : memref<36x8x1xf32, #tpu.memory_space<vmem>>, vector<1x8x1xf32>
    %55 = vector.shape_cast %54 : vector<1x8x1xf32> to vector<8x1xf32>
    %56 = vector.broadcast %55 : vector<8x1xf32> to vector<8x256xf32>
    %57 = arith.mulf %56, %19 : vector<8x256xf32>
    %58 = arith.addf %53, %57 : vector<8x256xf32>
    %c4 = arith.constant 4 : index
    %c0_36 = arith.constant 0 : index
    %c0_37 = arith.constant 0 : index
    %59 = vector.load %arg3[%c4, %c0_36, %c0_37] : memref<36x8x1xf32, #tpu.memory_space<vmem>>, vector<1x8x1xf32>
    %60 = vector.shape_cast %59 : vector<1x8x1xf32> to vector<8x1xf32>
    %61 = vector.broadcast %60 : vector<8x1xf32> to vector<8x256xf32>
    %62 = arith.mulf %61, %0 : vector<8x256xf32>
    %63 = arith.addf %58, %62 : vector<8x256xf32>
    %c5 = arith.constant 5 : index
    %c0_38 = arith.constant 0 : index
    %c0_39 = arith.constant 0 : index
    %64 = vector.load %arg3[%c5, %c0_38, %c0_39] : memref<36x8x1xf32, #tpu.memory_space<vmem>>, vector<1x8x1xf32>
    %65 = vector.shape_cast %64 : vector<1x8x1xf32> to vector<8x1xf32>
    %66 = vector.broadcast %65 : vector<8x1xf32> to vector<8x256xf32>
    %67 = arith.mulf %66, %20 : vector<8x256xf32>
    %68 = arith.addf %63, %67 : vector<8x256xf32>
    %c6 = arith.constant 6 : index
    %c0_40 = arith.constant 0 : index
    %c0_41 = arith.constant 0 : index
    %69 = vector.load %arg3[%c6, %c0_40, %c0_41] : memref<36x8x1xf32, #tpu.memory_space<vmem>>, vector<1x8x1xf32>
    %70 = vector.shape_cast %69 : vector<1x8x1xf32> to vector<8x1xf32>
    %71 = vector.broadcast %70 : vector<8x1xf32> to vector<8x256xf32>
    %72 = arith.mulf %71, %32 : vector<8x256xf32>
    %73 = arith.addf %68, %72 : vector<8x256xf32>
    %c7 = arith.constant 7 : index
    %c0_42 = arith.constant 0 : index
    %c0_43 = arith.constant 0 : index
    %74 = vector.load %arg3[%c7, %c0_42, %c0_43] : memref<36x8x1xf32, #tpu.memory_space<vmem>>, vector<1x8x1xf32>
    %75 = vector.shape_cast %74 : vector<1x8x1xf32> to vector<8x1xf32>
    %76 = vector.broadcast %75 : vector<8x1xf32> to vector<8x256xf32>
    %77 = arith.mulf %76, %35 : vector<8x256xf32>
    %78 = arith.addf %73, %77 : vector<8x256xf32>
    %c8 = arith.constant 8 : index
    %c0_44 = arith.constant 0 : index
    %c0_45 = arith.constant 0 : index
    %79 = vector.load %arg3[%c8, %c0_44, %c0_45] : memref<36x8x1xf32, #tpu.memory_space<vmem>>, vector<1x8x1xf32>
    %80 = vector.shape_cast %79 : vector<1x8x1xf32> to vector<8x1xf32>
    %81 = vector.broadcast %80 : vector<8x1xf32> to vector<8x256xf32>
    %82 = arith.mulf %81, %38 : vector<8x256xf32>
    %83 = arith.addf %78, %82 : vector<8x256xf32>
    %c7_i32 = arith.constant 7 : i32
    %84 = tpu.dynamic_rotate %83 by %c7_i32 dim 0 : vector<8x256xf32>, i32 -> vector<8x256xf32>
    %85 = arith.addf %83, %84 : vector<8x256xf32>
    %c6_i32 = arith.constant 6 : i32
    %86 = tpu.dynamic_rotate %83 by %c6_i32 dim 0 : vector<8x256xf32>, i32 -> vector<8x256xf32>
    %87 = arith.addf %85, %86 : vector<8x256xf32>
    %c5_i32 = arith.constant 5 : i32
    %88 = tpu.dynamic_rotate %83 by %c5_i32 dim 0 : vector<8x256xf32>, i32 -> vector<8x256xf32>
    %89 = arith.addf %87, %88 : vector<8x256xf32>
    %c0_46 = arith.constant 0 : index
    %c0_47 = arith.constant 0 : index
    %c0_48 = arith.constant 0 : index
    %90 = vector.load %arg2[%c0_46, %c0_47, %c0_48] : memref<4x8x1xf32, #tpu.memory_space<vmem>>, vector<1x8x1xf32>
    %91 = vector.shape_cast %90 : vector<1x8x1xf32> to vector<8x1xf32>
    %92 = vector.broadcast %91 : vector<8x1xf32> to vector<8x256xf32>
    %93 = arith.mulf %92, %89 : vector<8x256xf32>
    %94 = arith.addf %39, %93 : vector<8x256xf32>
    %c9 = arith.constant 9 : index
    %c0_49 = arith.constant 0 : index
    %c0_50 = arith.constant 0 : index
    %95 = vector.load %arg3[%c9, %c0_49, %c0_50] : memref<36x8x1xf32, #tpu.memory_space<vmem>>, vector<1x8x1xf32>
    %96 = vector.shape_cast %95 : vector<1x8x1xf32> to vector<8x1xf32>
    %97 = vector.broadcast %96 : vector<8x1xf32> to vector<8x256xf32>
    %98 = arith.mulf %97, %23 : vector<8x256xf32>
    %c10 = arith.constant 10 : index
    %c0_51 = arith.constant 0 : index
    %c0_52 = arith.constant 0 : index
    %99 = vector.load %arg3[%c10, %c0_51, %c0_52] : memref<36x8x1xf32, #tpu.memory_space<vmem>>, vector<1x8x1xf32>
    %100 = vector.shape_cast %99 : vector<1x8x1xf32> to vector<8x1xf32>
    %101 = vector.broadcast %100 : vector<8x1xf32> to vector<8x256xf32>
    %102 = arith.mulf %101, %26 : vector<8x256xf32>
    %103 = arith.addf %98, %102 : vector<8x256xf32>
    %c11 = arith.constant 11 : index
    %c0_53 = arith.constant 0 : index
    %c0_54 = arith.constant 0 : index
    %104 = vector.load %arg3[%c11, %c0_53, %c0_54] : memref<36x8x1xf32, #tpu.memory_space<vmem>>, vector<1x8x1xf32>
    %105 = vector.shape_cast %104 : vector<1x8x1xf32> to vector<8x1xf32>
    %106 = vector.broadcast %105 : vector<8x1xf32> to vector<8x256xf32>
    %107 = arith.mulf %106, %29 : vector<8x256xf32>
    %108 = arith.addf %103, %107 : vector<8x256xf32>
    %c12 = arith.constant 12 : index
    %c0_55 = arith.constant 0 : index
    %c0_56 = arith.constant 0 : index
    %109 = vector.load %arg3[%c12, %c0_55, %c0_56] : memref<36x8x1xf32, #tpu.memory_space<vmem>>, vector<1x8x1xf32>
    %110 = vector.shape_cast %109 : vector<1x8x1xf32> to vector<8x1xf32>
    %111 = vector.broadcast %110 : vector<8x1xf32> to vector<8x256xf32>
    %112 = arith.mulf %111, %19 : vector<8x256xf32>
    %113 = arith.addf %108, %112 : vector<8x256xf32>
    %c13 = arith.constant 13 : index
    %c0_57 = arith.constant 0 : index
    %c0_58 = arith.constant 0 : index
    %114 = vector.load %arg3[%c13, %c0_57, %c0_58] : memref<36x8x1xf32, #tpu.memory_space<vmem>>, vector<1x8x1xf32>
    %115 = vector.shape_cast %114 : vector<1x8x1xf32> to vector<8x1xf32>
    %116 = vector.broadcast %115 : vector<8x1xf32> to vector<8x256xf32>
    %117 = arith.mulf %116, %0 : vector<8x256xf32>
    %118 = arith.addf %113, %117 : vector<8x256xf32>
    %c14 = arith.constant 14 : index
    %c0_59 = arith.constant 0 : index
    %c0_60 = arith.constant 0 : index
    %119 = vector.load %arg3[%c14, %c0_59, %c0_60] : memref<36x8x1xf32, #tpu.memory_space<vmem>>, vector<1x8x1xf32>
    %120 = vector.shape_cast %119 : vector<1x8x1xf32> to vector<8x1xf32>
    %121 = vector.broadcast %120 : vector<8x1xf32> to vector<8x256xf32>
    %122 = arith.mulf %121, %20 : vector<8x256xf32>
    %123 = arith.addf %118, %122 : vector<8x256xf32>
    %c15 = arith.constant 15 : index
    %c0_61 = arith.constant 0 : index
    %c0_62 = arith.constant 0 : index
    %124 = vector.load %arg3[%c15, %c0_61, %c0_62] : memref<36x8x1xf32, #tpu.memory_space<vmem>>, vector<1x8x1xf32>
    %125 = vector.shape_cast %124 : vector<1x8x1xf32> to vector<8x1xf32>
    %126 = vector.broadcast %125 : vector<8x1xf32> to vector<8x256xf32>
    %127 = arith.mulf %126, %32 : vector<8x256xf32>
    %128 = arith.addf %123, %127 : vector<8x256xf32>
    %c16 = arith.constant 16 : index
    %c0_63 = arith.constant 0 : index
    %c0_64 = arith.constant 0 : index
    %129 = vector.load %arg3[%c16, %c0_63, %c0_64] : memref<36x8x1xf32, #tpu.memory_space<vmem>>, vector<1x8x1xf32>
    %130 = vector.shape_cast %129 : vector<1x8x1xf32> to vector<8x1xf32>
    %131 = vector.broadcast %130 : vector<8x1xf32> to vector<8x256xf32>
    %132 = arith.mulf %131, %35 : vector<8x256xf32>
    %133 = arith.addf %128, %132 : vector<8x256xf32>
    %c17 = arith.constant 17 : index
    %c0_65 = arith.constant 0 : index
    %c0_66 = arith.constant 0 : index
    %134 = vector.load %arg3[%c17, %c0_65, %c0_66] : memref<36x8x1xf32, #tpu.memory_space<vmem>>, vector<1x8x1xf32>
    %135 = vector.shape_cast %134 : vector<1x8x1xf32> to vector<8x1xf32>
    %136 = vector.broadcast %135 : vector<8x1xf32> to vector<8x256xf32>
    %137 = arith.mulf %136, %38 : vector<8x256xf32>
    %138 = arith.addf %133, %137 : vector<8x256xf32>
    %c1_i32_67 = arith.constant 1 : i32
    %139 = tpu.dynamic_rotate %138 by %c1_i32_67 dim 0 : vector<8x256xf32>, i32 -> vector<8x256xf32>
    %140 = arith.addf %139, %138 : vector<8x256xf32>
    %c7_i32_68 = arith.constant 7 : i32
    %141 = tpu.dynamic_rotate %138 by %c7_i32_68 dim 0 : vector<8x256xf32>, i32 -> vector<8x256xf32>
    %142 = arith.addf %140, %141 : vector<8x256xf32>
    %c6_i32_69 = arith.constant 6 : i32
    %143 = tpu.dynamic_rotate %138 by %c6_i32_69 dim 0 : vector<8x256xf32>, i32 -> vector<8x256xf32>
    %144 = arith.addf %142, %143 : vector<8x256xf32>
    %c1_70 = arith.constant 1 : index
    %c0_71 = arith.constant 0 : index
    %c0_72 = arith.constant 0 : index
    %145 = vector.load %arg2[%c1_70, %c0_71, %c0_72] : memref<4x8x1xf32, #tpu.memory_space<vmem>>, vector<1x8x1xf32>
    %146 = vector.shape_cast %145 : vector<1x8x1xf32> to vector<8x1xf32>
    %147 = vector.broadcast %146 : vector<8x1xf32> to vector<8x256xf32>
    %148 = arith.mulf %147, %144 : vector<8x256xf32>
    %149 = arith.addf %94, %148 : vector<8x256xf32>
    %c18 = arith.constant 18 : index
    %c0_73 = arith.constant 0 : index
    %c0_74 = arith.constant 0 : index
    %150 = vector.load %arg3[%c18, %c0_73, %c0_74] : memref<36x8x1xf32, #tpu.memory_space<vmem>>, vector<1x8x1xf32>
    %151 = vector.shape_cast %150 : vector<1x8x1xf32> to vector<8x1xf32>
    %152 = vector.broadcast %151 : vector<8x1xf32> to vector<8x256xf32>
    %153 = arith.mulf %152, %23 : vector<8x256xf32>
    %c19 = arith.constant 19 : index
    %c0_75 = arith.constant 0 : index
    %c0_76 = arith.constant 0 : index
    %154 = vector.load %arg3[%c19, %c0_75, %c0_76] : memref<36x8x1xf32, #tpu.memory_space<vmem>>, vector<1x8x1xf32>
    %155 = vector.shape_cast %154 : vector<1x8x1xf32> to vector<8x1xf32>
    %156 = vector.broadcast %155 : vector<8x1xf32> to vector<8x256xf32>
    %157 = arith.mulf %156, %26 : vector<8x256xf32>
    %158 = arith.addf %153, %157 : vector<8x256xf32>
    %c20 = arith.constant 20 : index
    %c0_77 = arith.constant 0 : index
    %c0_78 = arith.constant 0 : index
    %159 = vector.load %arg3[%c20, %c0_77, %c0_78] : memref<36x8x1xf32, #tpu.memory_space<vmem>>, vector<1x8x1xf32>
    %160 = vector.shape_cast %159 : vector<1x8x1xf32> to vector<8x1xf32>
    %161 = vector.broadcast %160 : vector<8x1xf32> to vector<8x256xf32>
    %162 = arith.mulf %161, %29 : vector<8x256xf32>
    %163 = arith.addf %158, %162 : vector<8x256xf32>
    %c21 = arith.constant 21 : index
    %c0_79 = arith.constant 0 : index
    %c0_80 = arith.constant 0 : index
    %164 = vector.load %arg3[%c21, %c0_79, %c0_80] : memref<36x8x1xf32, #tpu.memory_space<vmem>>, vector<1x8x1xf32>
    %165 = vector.shape_cast %164 : vector<1x8x1xf32> to vector<8x1xf32>
    %166 = vector.broadcast %165 : vector<8x1xf32> to vector<8x256xf32>
    %167 = arith.mulf %166, %19 : vector<8x256xf32>
    %168 = arith.addf %163, %167 : vector<8x256xf32>
    %c22 = arith.constant 22 : index
    %c0_81 = arith.constant 0 : index
    %c0_82 = arith.constant 0 : index
    %169 = vector.load %arg3[%c22, %c0_81, %c0_82] : memref<36x8x1xf32, #tpu.memory_space<vmem>>, vector<1x8x1xf32>
    %170 = vector.shape_cast %169 : vector<1x8x1xf32> to vector<8x1xf32>
    %171 = vector.broadcast %170 : vector<8x1xf32> to vector<8x256xf32>
    %172 = arith.mulf %171, %0 : vector<8x256xf32>
    %173 = arith.addf %168, %172 : vector<8x256xf32>
    %c23 = arith.constant 23 : index
    %c0_83 = arith.constant 0 : index
    %c0_84 = arith.constant 0 : index
    %174 = vector.load %arg3[%c23, %c0_83, %c0_84] : memref<36x8x1xf32, #tpu.memory_space<vmem>>, vector<1x8x1xf32>
    %175 = vector.shape_cast %174 : vector<1x8x1xf32> to vector<8x1xf32>
    %176 = vector.broadcast %175 : vector<8x1xf32> to vector<8x256xf32>
    %177 = arith.mulf %176, %20 : vector<8x256xf32>
    %178 = arith.addf %173, %177 : vector<8x256xf32>
    %c24 = arith.constant 24 : index
    %c0_85 = arith.constant 0 : index
    %c0_86 = arith.constant 0 : index
    %179 = vector.load %arg3[%c24, %c0_85, %c0_86] : memref<36x8x1xf32, #tpu.memory_space<vmem>>, vector<1x8x1xf32>
    %180 = vector.shape_cast %179 : vector<1x8x1xf32> to vector<8x1xf32>
    %181 = vector.broadcast %180 : vector<8x1xf32> to vector<8x256xf32>
    %182 = arith.mulf %181, %32 : vector<8x256xf32>
    %183 = arith.addf %178, %182 : vector<8x256xf32>
    %c25 = arith.constant 25 : index
    %c0_87 = arith.constant 0 : index
    %c0_88 = arith.constant 0 : index
    %184 = vector.load %arg3[%c25, %c0_87, %c0_88] : memref<36x8x1xf32, #tpu.memory_space<vmem>>, vector<1x8x1xf32>
    %185 = vector.shape_cast %184 : vector<1x8x1xf32> to vector<8x1xf32>
    %186 = vector.broadcast %185 : vector<8x1xf32> to vector<8x256xf32>
    %187 = arith.mulf %186, %35 : vector<8x256xf32>
    %188 = arith.addf %183, %187 : vector<8x256xf32>
    %c26 = arith.constant 26 : index
    %c0_89 = arith.constant 0 : index
    %c0_90 = arith.constant 0 : index
    %189 = vector.load %arg3[%c26, %c0_89, %c0_90] : memref<36x8x1xf32, #tpu.memory_space<vmem>>, vector<1x8x1xf32>
    %190 = vector.shape_cast %189 : vector<1x8x1xf32> to vector<8x1xf32>
    %191 = vector.broadcast %190 : vector<8x1xf32> to vector<8x256xf32>
    %192 = arith.mulf %191, %38 : vector<8x256xf32>
    %193 = arith.addf %188, %192 : vector<8x256xf32>
    %c2_i32 = arith.constant 2 : i32
    %194 = tpu.dynamic_rotate %193 by %c2_i32 dim 0 : vector<8x256xf32>, i32 -> vector<8x256xf32>
    %c1_i32_91 = arith.constant 1 : i32
    %195 = tpu.dynamic_rotate %193 by %c1_i32_91 dim 0 : vector<8x256xf32>, i32 -> vector<8x256xf32>
    %196 = arith.addf %194, %195 : vector<8x256xf32>
    %197 = arith.addf %196, %193 : vector<8x256xf32>
    %c7_i32_92 = arith.constant 7 : i32
    %198 = tpu.dynamic_rotate %193 by %c7_i32_92 dim 0 : vector<8x256xf32>, i32 -> vector<8x256xf32>
    %199 = arith.addf %197, %198 : vector<8x256xf32>
    %c2_93 = arith.constant 2 : index
    %c0_94 = arith.constant 0 : index
    %c0_95 = arith.constant 0 : index
    %200 = vector.load %arg2[%c2_93, %c0_94, %c0_95] : memref<4x8x1xf32, #tpu.memory_space<vmem>>, vector<1x8x1xf32>
    %201 = vector.shape_cast %200 : vector<1x8x1xf32> to vector<8x1xf32>
    %202 = vector.broadcast %201 : vector<8x1xf32> to vector<8x256xf32>
    %203 = arith.mulf %202, %199 : vector<8x256xf32>
    %204 = arith.addf %149, %203 : vector<8x256xf32>
    %c27 = arith.constant 27 : index
    %c0_96 = arith.constant 0 : index
    %c0_97 = arith.constant 0 : index
    %205 = vector.load %arg3[%c27, %c0_96, %c0_97] : memref<36x8x1xf32, #tpu.memory_space<vmem>>, vector<1x8x1xf32>
    %206 = vector.shape_cast %205 : vector<1x8x1xf32> to vector<8x1xf32>
    %207 = vector.broadcast %206 : vector<8x1xf32> to vector<8x256xf32>
    %208 = arith.mulf %207, %23 : vector<8x256xf32>
    %c28 = arith.constant 28 : index
    %c0_98 = arith.constant 0 : index
    %c0_99 = arith.constant 0 : index
    %209 = vector.load %arg3[%c28, %c0_98, %c0_99] : memref<36x8x1xf32, #tpu.memory_space<vmem>>, vector<1x8x1xf32>
    %210 = vector.shape_cast %209 : vector<1x8x1xf32> to vector<8x1xf32>
    %211 = vector.broadcast %210 : vector<8x1xf32> to vector<8x256xf32>
    %212 = arith.mulf %211, %26 : vector<8x256xf32>
    %213 = arith.addf %208, %212 : vector<8x256xf32>
    %c29 = arith.constant 29 : index
    %c0_100 = arith.constant 0 : index
    %c0_101 = arith.constant 0 : index
    %214 = vector.load %arg3[%c29, %c0_100, %c0_101] : memref<36x8x1xf32, #tpu.memory_space<vmem>>, vector<1x8x1xf32>
    %215 = vector.shape_cast %214 : vector<1x8x1xf32> to vector<8x1xf32>
    %216 = vector.broadcast %215 : vector<8x1xf32> to vector<8x256xf32>
    %217 = arith.mulf %216, %29 : vector<8x256xf32>
    %218 = arith.addf %213, %217 : vector<8x256xf32>
    %c30 = arith.constant 30 : index
    %c0_102 = arith.constant 0 : index
    %c0_103 = arith.constant 0 : index
    %219 = vector.load %arg3[%c30, %c0_102, %c0_103] : memref<36x8x1xf32, #tpu.memory_space<vmem>>, vector<1x8x1xf32>
    %220 = vector.shape_cast %219 : vector<1x8x1xf32> to vector<8x1xf32>
    %221 = vector.broadcast %220 : vector<8x1xf32> to vector<8x256xf32>
    %222 = arith.mulf %221, %19 : vector<8x256xf32>
    %223 = arith.addf %218, %222 : vector<8x256xf32>
    %c31 = arith.constant 31 : index
    %c0_104 = arith.constant 0 : index
    %c0_105 = arith.constant 0 : index
    %224 = vector.load %arg3[%c31, %c0_104, %c0_105] : memref<36x8x1xf32, #tpu.memory_space<vmem>>, vector<1x8x1xf32>
    %225 = vector.shape_cast %224 : vector<1x8x1xf32> to vector<8x1xf32>
    %226 = vector.broadcast %225 : vector<8x1xf32> to vector<8x256xf32>
    %227 = arith.mulf %226, %0 : vector<8x256xf32>
    %228 = arith.addf %223, %227 : vector<8x256xf32>
    %c32 = arith.constant 32 : index
    %c0_106 = arith.constant 0 : index
    %c0_107 = arith.constant 0 : index
    %229 = vector.load %arg3[%c32, %c0_106, %c0_107] : memref<36x8x1xf32, #tpu.memory_space<vmem>>, vector<1x8x1xf32>
    %230 = vector.shape_cast %229 : vector<1x8x1xf32> to vector<8x1xf32>
    %231 = vector.broadcast %230 : vector<8x1xf32> to vector<8x256xf32>
    %232 = arith.mulf %231, %20 : vector<8x256xf32>
    %233 = arith.addf %228, %232 : vector<8x256xf32>
    %c33 = arith.constant 33 : index
    %c0_108 = arith.constant 0 : index
    %c0_109 = arith.constant 0 : index
    %234 = vector.load %arg3[%c33, %c0_108, %c0_109] : memref<36x8x1xf32, #tpu.memory_space<vmem>>, vector<1x8x1xf32>
    %235 = vector.shape_cast %234 : vector<1x8x1xf32> to vector<8x1xf32>
    %236 = vector.broadcast %235 : vector<8x1xf32> to vector<8x256xf32>
    %237 = arith.mulf %236, %32 : vector<8x256xf32>
    %238 = arith.addf %233, %237 : vector<8x256xf32>
    %c34 = arith.constant 34 : index
    %c0_110 = arith.constant 0 : index
    %c0_111 = arith.constant 0 : index
    %239 = vector.load %arg3[%c34, %c0_110, %c0_111] : memref<36x8x1xf32, #tpu.memory_space<vmem>>, vector<1x8x1xf32>
    %240 = vector.shape_cast %239 : vector<1x8x1xf32> to vector<8x1xf32>
    %241 = vector.broadcast %240 : vector<8x1xf32> to vector<8x256xf32>
    %242 = arith.mulf %241, %35 : vector<8x256xf32>
    %243 = arith.addf %238, %242 : vector<8x256xf32>
    %c35 = arith.constant 35 : index
    %c0_112 = arith.constant 0 : index
    %c0_113 = arith.constant 0 : index
    %244 = vector.load %arg3[%c35, %c0_112, %c0_113] : memref<36x8x1xf32, #tpu.memory_space<vmem>>, vector<1x8x1xf32>
    %245 = vector.shape_cast %244 : vector<1x8x1xf32> to vector<8x1xf32>
    %246 = vector.broadcast %245 : vector<8x1xf32> to vector<8x256xf32>
    %247 = arith.mulf %246, %38 : vector<8x256xf32>
    %248 = arith.addf %243, %247 : vector<8x256xf32>
    %c3_i32 = arith.constant 3 : i32
    %249 = tpu.dynamic_rotate %248 by %c3_i32 dim 0 : vector<8x256xf32>, i32 -> vector<8x256xf32>
    %c2_i32_114 = arith.constant 2 : i32
    %250 = tpu.dynamic_rotate %248 by %c2_i32_114 dim 0 : vector<8x256xf32>, i32 -> vector<8x256xf32>
    %251 = arith.addf %249, %250 : vector<8x256xf32>
    %c1_i32_115 = arith.constant 1 : i32
    %252 = tpu.dynamic_rotate %248 by %c1_i32_115 dim 0 : vector<8x256xf32>, i32 -> vector<8x256xf32>
    %253 = arith.addf %251, %252 : vector<8x256xf32>
    %254 = arith.addf %253, %248 : vector<8x256xf32>
    %c3_116 = arith.constant 3 : index
    %c0_117 = arith.constant 0 : index
    %c0_118 = arith.constant 0 : index
    %255 = vector.load %arg2[%c3_116, %c0_117, %c0_118] : memref<4x8x1xf32, #tpu.memory_space<vmem>>, vector<1x8x1xf32>
    %256 = vector.shape_cast %255 : vector<1x8x1xf32> to vector<8x1xf32>
    %257 = vector.broadcast %256 : vector<8x1xf32> to vector<8x256xf32>
    %258 = arith.mulf %257, %254 : vector<8x256xf32>
    %259 = arith.addf %204, %258 : vector<8x256xf32>
    %cst_119 = arith.constant dense<0.000000e+00> : vector<8xf32>
    %260 = vector.multi_reduction <add>, %259, %cst_119 [1] : vector<8x256xf32> to vector<8xf32>
    %261 = vector.shape_cast %260 : vector<8xf32> to vector<8x1xf32>
    %c4_i32 = arith.constant 4 : i32
    %262 = tpu.dynamic_rotate %261 by %c4_i32 dim 0 : vector<8x1xf32>, i32 -> vector<8x1xf32>
    %263 = arith.addf %261, %262 : vector<8x1xf32>
    %cst_120 = arith.constant 0.001953125 : f32
    %264 = vector.broadcast %cst_120 : f32 to vector<8x1xf32>
    %265 = arith.mulf %263, %264 : vector<8x1xf32>
    %266 = vector.broadcast %265 : vector<8x1xf32> to vector<8x256xf32>
    %267 = arith.subf %259, %266 : vector<8x256xf32>
    %268 = arith.mulf %267, %267 : vector<8x256xf32>
    %cst_121 = arith.constant dense<0.000000e+00> : vector<8xf32>
    %269 = vector.multi_reduction <add>, %268, %cst_121 [1] : vector<8x256xf32> to vector<8xf32>
    %270 = vector.shape_cast %269 : vector<8xf32> to vector<8x1xf32>
    %c4_i32_122 = arith.constant 4 : i32
    %271 = tpu.dynamic_rotate %270 by %c4_i32_122 dim 0 : vector<8x1xf32>, i32 -> vector<8x1xf32>
    %272 = arith.addf %270, %271 : vector<8x1xf32>
    %cst_123 = arith.constant 0.001953125 : f32
    %273 = vector.broadcast %cst_123 : f32 to vector<8x1xf32>
    %274 = arith.mulf %272, %273 : vector<8x1xf32>
    %cst_124 = arith.constant 9.99999974E-6 : f32
    %275 = vector.broadcast %cst_124 : f32 to vector<8x1xf32>
    %276 = arith.addf %274, %275 : vector<8x1xf32>
    %277 = math.rsqrt %276 : vector<8x1xf32>
    %c0_125 = arith.constant 0 : index
    %c0_126 = arith.constant 0 : index
    %278 = vector.load %arg4[%c0_125, %c0_126] : memref<8x1xf32, #tpu.memory_space<vmem>>, vector<8x1xf32>
    %279 = arith.mulf %277, %278 : vector<8x1xf32>
    %280 = vector.broadcast %279 : vector<8x1xf32> to vector<8x256xf32>
    %281 = arith.mulf %267, %280 : vector<8x256xf32>
    %c0_127 = arith.constant 0 : index
    %c0_128 = arith.constant 0 : index
    %282 = vector.load %arg5[%c0_127, %c0_128] : memref<8x1xf32, #tpu.memory_space<vmem>>, vector<8x1xf32>
    %283 = vector.broadcast %282 : vector<8x1xf32> to vector<8x256xf32>
    %284 = arith.addf %281, %283 : vector<8x256xf32>
    %cst_129 = arith.constant 0.000000e+00 : f32
    %285 = vector.broadcast %cst_129 : f32 to vector<8x256xf32>
    %286 = arith.maximumf %284, %285 : vector<8x256xf32>
    %c255_i32_130 = arith.constant 255 : i32
    %287 = tpu.dynamic_rotate %286 by %c255_i32_130 dim 1 : vector<8x256xf32>, i32 -> vector<8x256xf32>
    %c1_i32_131 = arith.constant 1 : i32
    %288 = tpu.dynamic_rotate %286 by %c1_i32_131 dim 1 : vector<8x256xf32>, i32 -> vector<8x256xf32>
    %289 = arith.select %4, %287, %288 : vector<8x256xi1>, vector<8x256xf32>
    %290 = arith.select %8, %288, %287 : vector<8x256xi1>, vector<8x256xf32>
    %c240_i32_132 = arith.constant 240 : i32
    %291 = tpu.dynamic_rotate %289 by %c240_i32_132 dim 1 : vector<8x256xf32>, i32 -> vector<8x256xf32>
    %c16_i32_133 = arith.constant 16 : i32
    %292 = tpu.dynamic_rotate %289 by %c16_i32_133 dim 1 : vector<8x256xf32>, i32 -> vector<8x256xf32>
    %293 = arith.select %12, %291, %292 : vector<8x256xi1>, vector<8x256xf32>
    %c240_i32_134 = arith.constant 240 : i32
    %294 = tpu.dynamic_rotate %286 by %c240_i32_134 dim 1 : vector<8x256xf32>, i32 -> vector<8x256xf32>
    %c16_i32_135 = arith.constant 16 : i32
    %295 = tpu.dynamic_rotate %286 by %c16_i32_135 dim 1 : vector<8x256xf32>, i32 -> vector<8x256xf32>
    %296 = arith.select %12, %294, %295 : vector<8x256xi1>, vector<8x256xf32>
    %c240_i32_136 = arith.constant 240 : i32
    %297 = tpu.dynamic_rotate %290 by %c240_i32_136 dim 1 : vector<8x256xf32>, i32 -> vector<8x256xf32>
    %c16_i32_137 = arith.constant 16 : i32
    %298 = tpu.dynamic_rotate %290 by %c16_i32_137 dim 1 : vector<8x256xf32>, i32 -> vector<8x256xf32>
    %299 = arith.select %12, %297, %298 : vector<8x256xi1>, vector<8x256xf32>
    %c240_i32_138 = arith.constant 240 : i32
    %300 = tpu.dynamic_rotate %289 by %c240_i32_138 dim 1 : vector<8x256xf32>, i32 -> vector<8x256xf32>
    %c16_i32_139 = arith.constant 16 : i32
    %301 = tpu.dynamic_rotate %289 by %c16_i32_139 dim 1 : vector<8x256xf32>, i32 -> vector<8x256xf32>
    %302 = arith.select %16, %301, %300 : vector<8x256xi1>, vector<8x256xf32>
    %c240_i32_140 = arith.constant 240 : i32
    %303 = tpu.dynamic_rotate %286 by %c240_i32_140 dim 1 : vector<8x256xf32>, i32 -> vector<8x256xf32>
    %c16_i32_141 = arith.constant 16 : i32
    %304 = tpu.dynamic_rotate %286 by %c16_i32_141 dim 1 : vector<8x256xf32>, i32 -> vector<8x256xf32>
    %305 = arith.select %16, %304, %303 : vector<8x256xi1>, vector<8x256xf32>
    %c240_i32_142 = arith.constant 240 : i32
    %306 = tpu.dynamic_rotate %290 by %c240_i32_142 dim 1 : vector<8x256xf32>, i32 -> vector<8x256xf32>
    %c16_i32_143 = arith.constant 16 : i32
    %307 = tpu.dynamic_rotate %290 by %c16_i32_143 dim 1 : vector<8x256xf32>, i32 -> vector<8x256xf32>
    %308 = arith.select %16, %307, %306 : vector<8x256xi1>, vector<8x256xf32>
    %cst_144 = arith.constant 0.000000e+00 : f32
    %309 = vector.broadcast %cst_144 : f32 to vector<8x256xf32>
    %c0_145 = arith.constant 0 : index
    %c0_146 = arith.constant 0 : index
    %c0_147 = arith.constant 0 : index
    %310 = vector.load %arg6[%c0_145, %c0_146, %c0_147] : memref<36x8x1xf32, #tpu.memory_space<vmem>>, vector<1x8x1xf32>
    %311 = vector.shape_cast %310 : vector<1x8x1xf32> to vector<8x1xf32>
    %312 = vector.broadcast %311 : vector<8x1xf32> to vector<8x256xf32>
    %313 = arith.mulf %312, %293 : vector<8x256xf32>
    %c1_148 = arith.constant 1 : index
    %c0_149 = arith.constant 0 : index
    %c0_150 = arith.constant 0 : index
    %314 = vector.load %arg6[%c1_148, %c0_149, %c0_150] : memref<36x8x1xf32, #tpu.memory_space<vmem>>, vector<1x8x1xf32>
    %315 = vector.shape_cast %314 : vector<1x8x1xf32> to vector<8x1xf32>
    %316 = vector.broadcast %315 : vector<8x1xf32> to vector<8x256xf32>
    %317 = arith.mulf %316, %296 : vector<8x256xf32>
    %318 = arith.addf %313, %317 : vector<8x256xf32>
    %c2_151 = arith.constant 2 : index
    %c0_152 = arith.constant 0 : index
    %c0_153 = arith.constant 0 : index
    %319 = vector.load %arg6[%c2_151, %c0_152, %c0_153] : memref<36x8x1xf32, #tpu.memory_space<vmem>>, vector<1x8x1xf32>
    %320 = vector.shape_cast %319 : vector<1x8x1xf32> to vector<8x1xf32>
    %321 = vector.broadcast %320 : vector<8x1xf32> to vector<8x256xf32>
    %322 = arith.mulf %321, %299 : vector<8x256xf32>
    %323 = arith.addf %318, %322 : vector<8x256xf32>
    %c3_154 = arith.constant 3 : index
    %c0_155 = arith.constant 0 : index
    %c0_156 = arith.constant 0 : index
    %324 = vector.load %arg6[%c3_154, %c0_155, %c0_156] : memref<36x8x1xf32, #tpu.memory_space<vmem>>, vector<1x8x1xf32>
    %325 = vector.shape_cast %324 : vector<1x8x1xf32> to vector<8x1xf32>
    %326 = vector.broadcast %325 : vector<8x1xf32> to vector<8x256xf32>
    %327 = arith.mulf %326, %289 : vector<8x256xf32>
    %328 = arith.addf %323, %327 : vector<8x256xf32>
    %c4_157 = arith.constant 4 : index
    %c0_158 = arith.constant 0 : index
    %c0_159 = arith.constant 0 : index
    %329 = vector.load %arg6[%c4_157, %c0_158, %c0_159] : memref<36x8x1xf32, #tpu.memory_space<vmem>>, vector<1x8x1xf32>
    %330 = vector.shape_cast %329 : vector<1x8x1xf32> to vector<8x1xf32>
    %331 = vector.broadcast %330 : vector<8x1xf32> to vector<8x256xf32>
    %332 = arith.mulf %331, %286 : vector<8x256xf32>
    %333 = arith.addf %328, %332 : vector<8x256xf32>
    %c5_160 = arith.constant 5 : index
    %c0_161 = arith.constant 0 : index
    %c0_162 = arith.constant 0 : index
    %334 = vector.load %arg6[%c5_160, %c0_161, %c0_162] : memref<36x8x1xf32, #tpu.memory_space<vmem>>, vector<1x8x1xf32>
    %335 = vector.shape_cast %334 : vector<1x8x1xf32> to vector<8x1xf32>
    %336 = vector.broadcast %335 : vector<8x1xf32> to vector<8x256xf32>
    %337 = arith.mulf %336, %290 : vector<8x256xf32>
    %338 = arith.addf %333, %337 : vector<8x256xf32>
    %c6_163 = arith.constant 6 : index
    %c0_164 = arith.constant 0 : index
    %c0_165 = arith.constant 0 : index
    %339 = vector.load %arg6[%c6_163, %c0_164, %c0_165] : memref<36x8x1xf32, #tpu.memory_space<vmem>>, vector<1x8x1xf32>
    %340 = vector.shape_cast %339 : vector<1x8x1xf32> to vector<8x1xf32>
    %341 = vector.broadcast %340 : vector<8x1xf32> to vector<8x256xf32>
    %342 = arith.mulf %341, %302 : vector<8x256xf32>
    %343 = arith.addf %338, %342 : vector<8x256xf32>
    %c7_166 = arith.constant 7 : index
    %c0_167 = arith.constant 0 : index
    %c0_168 = arith.constant 0 : index
    %344 = vector.load %arg6[%c7_166, %c0_167, %c0_168] : memref<36x8x1xf32, #tpu.memory_space<vmem>>, vector<1x8x1xf32>
    %345 = vector.shape_cast %344 : vector<1x8x1xf32> to vector<8x1xf32>
    %346 = vector.broadcast %345 : vector<8x1xf32> to vector<8x256xf32>
    %347 = arith.mulf %346, %305 : vector<8x256xf32>
    %348 = arith.addf %343, %347 : vector<8x256xf32>
    %c8_169 = arith.constant 8 : index
    %c0_170 = arith.constant 0 : index
    %c0_171 = arith.constant 0 : index
    %349 = vector.load %arg6[%c8_169, %c0_170, %c0_171] : memref<36x8x1xf32, #tpu.memory_space<vmem>>, vector<1x8x1xf32>
    %350 = vector.shape_cast %349 : vector<1x8x1xf32> to vector<8x1xf32>
    %351 = vector.broadcast %350 : vector<8x1xf32> to vector<8x256xf32>
    %352 = arith.mulf %351, %308 : vector<8x256xf32>
    %353 = arith.addf %348, %352 : vector<8x256xf32>
    %c7_i32_172 = arith.constant 7 : i32
    %354 = tpu.dynamic_rotate %353 by %c7_i32_172 dim 0 : vector<8x256xf32>, i32 -> vector<8x256xf32>
    %355 = arith.addf %353, %354 : vector<8x256xf32>
    %c6_i32_173 = arith.constant 6 : i32
    %356 = tpu.dynamic_rotate %353 by %c6_i32_173 dim 0 : vector<8x256xf32>, i32 -> vector<8x256xf32>
    %357 = arith.addf %355, %356 : vector<8x256xf32>
    %c5_i32_174 = arith.constant 5 : i32
    %358 = tpu.dynamic_rotate %353 by %c5_i32_174 dim 0 : vector<8x256xf32>, i32 -> vector<8x256xf32>
    %359 = arith.addf %357, %358 : vector<8x256xf32>
    %c0_175 = arith.constant 0 : index
    %c0_176 = arith.constant 0 : index
    %c0_177 = arith.constant 0 : index
    %360 = vector.load %arg2[%c0_175, %c0_176, %c0_177] : memref<4x8x1xf32, #tpu.memory_space<vmem>>, vector<1x8x1xf32>
    %361 = vector.shape_cast %360 : vector<1x8x1xf32> to vector<8x1xf32>
    %362 = vector.broadcast %361 : vector<8x1xf32> to vector<8x256xf32>
    %363 = arith.mulf %362, %359 : vector<8x256xf32>
    %364 = arith.addf %309, %363 : vector<8x256xf32>
    %c9_178 = arith.constant 9 : index
    %c0_179 = arith.constant 0 : index
    %c0_180 = arith.constant 0 : index
    %365 = vector.load %arg6[%c9_178, %c0_179, %c0_180] : memref<36x8x1xf32, #tpu.memory_space<vmem>>, vector<1x8x1xf32>
    %366 = vector.shape_cast %365 : vector<1x8x1xf32> to vector<8x1xf32>
    %367 = vector.broadcast %366 : vector<8x1xf32> to vector<8x256xf32>
    %368 = arith.mulf %367, %293 : vector<8x256xf32>
    %c10_181 = arith.constant 10 : index
    %c0_182 = arith.constant 0 : index
    %c0_183 = arith.constant 0 : index
    %369 = vector.load %arg6[%c10_181, %c0_182, %c0_183] : memref<36x8x1xf32, #tpu.memory_space<vmem>>, vector<1x8x1xf32>
    %370 = vector.shape_cast %369 : vector<1x8x1xf32> to vector<8x1xf32>
    %371 = vector.broadcast %370 : vector<8x1xf32> to vector<8x256xf32>
    %372 = arith.mulf %371, %296 : vector<8x256xf32>
    %373 = arith.addf %368, %372 : vector<8x256xf32>
    %c11_184 = arith.constant 11 : index
    %c0_185 = arith.constant 0 : index
    %c0_186 = arith.constant 0 : index
    %374 = vector.load %arg6[%c11_184, %c0_185, %c0_186] : memref<36x8x1xf32, #tpu.memory_space<vmem>>, vector<1x8x1xf32>
    %375 = vector.shape_cast %374 : vector<1x8x1xf32> to vector<8x1xf32>
    %376 = vector.broadcast %375 : vector<8x1xf32> to vector<8x256xf32>
    %377 = arith.mulf %376, %299 : vector<8x256xf32>
    %378 = arith.addf %373, %377 : vector<8x256xf32>
    %c12_187 = arith.constant 12 : index
    %c0_188 = arith.constant 0 : index
    %c0_189 = arith.constant 0 : index
    %379 = vector.load %arg6[%c12_187, %c0_188, %c0_189] : memref<36x8x1xf32, #tpu.memory_space<vmem>>, vector<1x8x1xf32>
    %380 = vector.shape_cast %379 : vector<1x8x1xf32> to vector<8x1xf32>
    %381 = vector.broadcast %380 : vector<8x1xf32> to vector<8x256xf32>
    %382 = arith.mulf %381, %289 : vector<8x256xf32>
    %383 = arith.addf %378, %382 : vector<8x256xf32>
    %c13_190 = arith.constant 13 : index
    %c0_191 = arith.constant 0 : index
    %c0_192 = arith.constant 0 : index
    %384 = vector.load %arg6[%c13_190, %c0_191, %c0_192] : memref<36x8x1xf32, #tpu.memory_space<vmem>>, vector<1x8x1xf32>
    %385 = vector.shape_cast %384 : vector<1x8x1xf32> to vector<8x1xf32>
    %386 = vector.broadcast %385 : vector<8x1xf32> to vector<8x256xf32>
    %387 = arith.mulf %386, %286 : vector<8x256xf32>
    %388 = arith.addf %383, %387 : vector<8x256xf32>
    %c14_193 = arith.constant 14 : index
    %c0_194 = arith.constant 0 : index
    %c0_195 = arith.constant 0 : index
    %389 = vector.load %arg6[%c14_193, %c0_194, %c0_195] : memref<36x8x1xf32, #tpu.memory_space<vmem>>, vector<1x8x1xf32>
    %390 = vector.shape_cast %389 : vector<1x8x1xf32> to vector<8x1xf32>
    %391 = vector.broadcast %390 : vector<8x1xf32> to vector<8x256xf32>
    %392 = arith.mulf %391, %290 : vector<8x256xf32>
    %393 = arith.addf %388, %392 : vector<8x256xf32>
    %c15_196 = arith.constant 15 : index
    %c0_197 = arith.constant 0 : index
    %c0_198 = arith.constant 0 : index
    %394 = vector.load %arg6[%c15_196, %c0_197, %c0_198] : memref<36x8x1xf32, #tpu.memory_space<vmem>>, vector<1x8x1xf32>
    %395 = vector.shape_cast %394 : vector<1x8x1xf32> to vector<8x1xf32>
    %396 = vector.broadcast %395 : vector<8x1xf32> to vector<8x256xf32>
    %397 = arith.mulf %396, %302 : vector<8x256xf32>
    %398 = arith.addf %393, %397 : vector<8x256xf32>
    %c16_199 = arith.constant 16 : index
    %c0_200 = arith.constant 0 : index
    %c0_201 = arith.constant 0 : index
    %399 = vector.load %arg6[%c16_199, %c0_200, %c0_201] : memref<36x8x1xf32, #tpu.memory_space<vmem>>, vector<1x8x1xf32>
    %400 = vector.shape_cast %399 : vector<1x8x1xf32> to vector<8x1xf32>
    %401 = vector.broadcast %400 : vector<8x1xf32> to vector<8x256xf32>
    %402 = arith.mulf %401, %305 : vector<8x256xf32>
    %403 = arith.addf %398, %402 : vector<8x256xf32>
    %c17_202 = arith.constant 17 : index
    %c0_203 = arith.constant 0 : index
    %c0_204 = arith.constant 0 : index
    %404 = vector.load %arg6[%c17_202, %c0_203, %c0_204] : memref<36x8x1xf32, #tpu.memory_space<vmem>>, vector<1x8x1xf32>
    %405 = vector.shape_cast %404 : vector<1x8x1xf32> to vector<8x1xf32>
    %406 = vector.broadcast %405 : vector<8x1xf32> to vector<8x256xf32>
    %407 = arith.mulf %406, %308 : vector<8x256xf32>
    %408 = arith.addf %403, %407 : vector<8x256xf32>
    %c1_i32_205 = arith.constant 1 : i32
    %409 = tpu.dynamic_rotate %408 by %c1_i32_205 dim 0 : vector<8x256xf32>, i32 -> vector<8x256xf32>
    %410 = arith.addf %409, %408 : vector<8x256xf32>
    %c7_i32_206 = arith.constant 7 : i32
    %411 = tpu.dynamic_rotate %408 by %c7_i32_206 dim 0 : vector<8x256xf32>, i32 -> vector<8x256xf32>
    %412 = arith.addf %410, %411 : vector<8x256xf32>
    %c6_i32_207 = arith.constant 6 : i32
    %413 = tpu.dynamic_rotate %408 by %c6_i32_207 dim 0 : vector<8x256xf32>, i32 -> vector<8x256xf32>
    %414 = arith.addf %412, %413 : vector<8x256xf32>
    %c1_208 = arith.constant 1 : index
    %c0_209 = arith.constant 0 : index
    %c0_210 = arith.constant 0 : index
    %415 = vector.load %arg2[%c1_208, %c0_209, %c0_210] : memref<4x8x1xf32, #tpu.memory_space<vmem>>, vector<1x8x1xf32>
    %416 = vector.shape_cast %415 : vector<1x8x1xf32> to vector<8x1xf32>
    %417 = vector.broadcast %416 : vector<8x1xf32> to vector<8x256xf32>
    %418 = arith.mulf %417, %414 : vector<8x256xf32>
    %419 = arith.addf %364, %418 : vector<8x256xf32>
    %c18_211 = arith.constant 18 : index
    %c0_212 = arith.constant 0 : index
    %c0_213 = arith.constant 0 : index
    %420 = vector.load %arg6[%c18_211, %c0_212, %c0_213] : memref<36x8x1xf32, #tpu.memory_space<vmem>>, vector<1x8x1xf32>
    %421 = vector.shape_cast %420 : vector<1x8x1xf32> to vector<8x1xf32>
    %422 = vector.broadcast %421 : vector<8x1xf32> to vector<8x256xf32>
    %423 = arith.mulf %422, %293 : vector<8x256xf32>
    %c19_214 = arith.constant 19 : index
    %c0_215 = arith.constant 0 : index
    %c0_216 = arith.constant 0 : index
    %424 = vector.load %arg6[%c19_214, %c0_215, %c0_216] : memref<36x8x1xf32, #tpu.memory_space<vmem>>, vector<1x8x1xf32>
    %425 = vector.shape_cast %424 : vector<1x8x1xf32> to vector<8x1xf32>
    %426 = vector.broadcast %425 : vector<8x1xf32> to vector<8x256xf32>
    %427 = arith.mulf %426, %296 : vector<8x256xf32>
    %428 = arith.addf %423, %427 : vector<8x256xf32>
    %c20_217 = arith.constant 20 : index
    %c0_218 = arith.constant 0 : index
    %c0_219 = arith.constant 0 : index
    %429 = vector.load %arg6[%c20_217, %c0_218, %c0_219] : memref<36x8x1xf32, #tpu.memory_space<vmem>>, vector<1x8x1xf32>
    %430 = vector.shape_cast %429 : vector<1x8x1xf32> to vector<8x1xf32>
    %431 = vector.broadcast %430 : vector<8x1xf32> to vector<8x256xf32>
    %432 = arith.mulf %431, %299 : vector<8x256xf32>
    %433 = arith.addf %428, %432 : vector<8x256xf32>
    %c21_220 = arith.constant 21 : index
    %c0_221 = arith.constant 0 : index
    %c0_222 = arith.constant 0 : index
    %434 = vector.load %arg6[%c21_220, %c0_221, %c0_222] : memref<36x8x1xf32, #tpu.memory_space<vmem>>, vector<1x8x1xf32>
    %435 = vector.shape_cast %434 : vector<1x8x1xf32> to vector<8x1xf32>
    %436 = vector.broadcast %435 : vector<8x1xf32> to vector<8x256xf32>
    %437 = arith.mulf %436, %289 : vector<8x256xf32>
    %438 = arith.addf %433, %437 : vector<8x256xf32>
    %c22_223 = arith.constant 22 : index
    %c0_224 = arith.constant 0 : index
    %c0_225 = arith.constant 0 : index
    %439 = vector.load %arg6[%c22_223, %c0_224, %c0_225] : memref<36x8x1xf32, #tpu.memory_space<vmem>>, vector<1x8x1xf32>
    %440 = vector.shape_cast %439 : vector<1x8x1xf32> to vector<8x1xf32>
    %441 = vector.broadcast %440 : vector<8x1xf32> to vector<8x256xf32>
    %442 = arith.mulf %441, %286 : vector<8x256xf32>
    %443 = arith.addf %438, %442 : vector<8x256xf32>
    %c23_226 = arith.constant 23 : index
    %c0_227 = arith.constant 0 : index
    %c0_228 = arith.constant 0 : index
    %444 = vector.load %arg6[%c23_226, %c0_227, %c0_228] : memref<36x8x1xf32, #tpu.memory_space<vmem>>, vector<1x8x1xf32>
    %445 = vector.shape_cast %444 : vector<1x8x1xf32> to vector<8x1xf32>
    %446 = vector.broadcast %445 : vector<8x1xf32> to vector<8x256xf32>
    %447 = arith.mulf %446, %290 : vector<8x256xf32>
    %448 = arith.addf %443, %447 : vector<8x256xf32>
    %c24_229 = arith.constant 24 : index
    %c0_230 = arith.constant 0 : index
    %c0_231 = arith.constant 0 : index
    %449 = vector.load %arg6[%c24_229, %c0_230, %c0_231] : memref<36x8x1xf32, #tpu.memory_space<vmem>>, vector<1x8x1xf32>
    %450 = vector.shape_cast %449 : vector<1x8x1xf32> to vector<8x1xf32>
    %451 = vector.broadcast %450 : vector<8x1xf32> to vector<8x256xf32>
    %452 = arith.mulf %451, %302 : vector<8x256xf32>
    %453 = arith.addf %448, %452 : vector<8x256xf32>
    %c25_232 = arith.constant 25 : index
    %c0_233 = arith.constant 0 : index
    %c0_234 = arith.constant 0 : index
    %454 = vector.load %arg6[%c25_232, %c0_233, %c0_234] : memref<36x8x1xf32, #tpu.memory_space<vmem>>, vector<1x8x1xf32>
    %455 = vector.shape_cast %454 : vector<1x8x1xf32> to vector<8x1xf32>
    %456 = vector.broadcast %455 : vector<8x1xf32> to vector<8x256xf32>
    %457 = arith.mulf %456, %305 : vector<8x256xf32>
    %458 = arith.addf %453, %457 : vector<8x256xf32>
    %c26_235 = arith.constant 26 : index
    %c0_236 = arith.constant 0 : index
    %c0_237 = arith.constant 0 : index
    %459 = vector.load %arg6[%c26_235, %c0_236, %c0_237] : memref<36x8x1xf32, #tpu.memory_space<vmem>>, vector<1x8x1xf32>
    %460 = vector.shape_cast %459 : vector<1x8x1xf32> to vector<8x1xf32>
    %461 = vector.broadcast %460 : vector<8x1xf32> to vector<8x256xf32>
    %462 = arith.mulf %461, %308 : vector<8x256xf32>
    %463 = arith.addf %458, %462 : vector<8x256xf32>
    %c2_i32_238 = arith.constant 2 : i32
    %464 = tpu.dynamic_rotate %463 by %c2_i32_238 dim 0 : vector<8x256xf32>, i32 -> vector<8x256xf32>
    %c1_i32_239 = arith.constant 1 : i32
    %465 = tpu.dynamic_rotate %463 by %c1_i32_239 dim 0 : vector<8x256xf32>, i32 -> vector<8x256xf32>
    %466 = arith.addf %464, %465 : vector<8x256xf32>
    %467 = arith.addf %466, %463 : vector<8x256xf32>
    %c7_i32_240 = arith.constant 7 : i32
    %468 = tpu.dynamic_rotate %463 by %c7_i32_240 dim 0 : vector<8x256xf32>, i32 -> vector<8x256xf32>
    %469 = arith.addf %467, %468 : vector<8x256xf32>
    %c2_241 = arith.constant 2 : index
    %c0_242 = arith.constant 0 : index
    %c0_243 = arith.constant 0 : index
    %470 = vector.load %arg2[%c2_241, %c0_242, %c0_243] : memref<4x8x1xf32, #tpu.memory_space<vmem>>, vector<1x8x1xf32>
    %471 = vector.shape_cast %470 : vector<1x8x1xf32> to vector<8x1xf32>
    %472 = vector.broadcast %471 : vector<8x1xf32> to vector<8x256xf32>
    %473 = arith.mulf %472, %469 : vector<8x256xf32>
    %474 = arith.addf %419, %473 : vector<8x256xf32>
    %c27_244 = arith.constant 27 : index
    %c0_245 = arith.constant 0 : index
    %c0_246 = arith.constant 0 : index
    %475 = vector.load %arg6[%c27_244, %c0_245, %c0_246] : memref<36x8x1xf32, #tpu.memory_space<vmem>>, vector<1x8x1xf32>
    %476 = vector.shape_cast %475 : vector<1x8x1xf32> to vector<8x1xf32>
    %477 = vector.broadcast %476 : vector<8x1xf32> to vector<8x256xf32>
    %478 = arith.mulf %477, %293 : vector<8x256xf32>
    %c28_247 = arith.constant 28 : index
    %c0_248 = arith.constant 0 : index
    %c0_249 = arith.constant 0 : index
    %479 = vector.load %arg6[%c28_247, %c0_248, %c0_249] : memref<36x8x1xf32, #tpu.memory_space<vmem>>, vector<1x8x1xf32>
    %480 = vector.shape_cast %479 : vector<1x8x1xf32> to vector<8x1xf32>
    %481 = vector.broadcast %480 : vector<8x1xf32> to vector<8x256xf32>
    %482 = arith.mulf %481, %296 : vector<8x256xf32>
    %483 = arith.addf %478, %482 : vector<8x256xf32>
    %c29_250 = arith.constant 29 : index
    %c0_251 = arith.constant 0 : index
    %c0_252 = arith.constant 0 : index
    %484 = vector.load %arg6[%c29_250, %c0_251, %c0_252] : memref<36x8x1xf32, #tpu.memory_space<vmem>>, vector<1x8x1xf32>
    %485 = vector.shape_cast %484 : vector<1x8x1xf32> to vector<8x1xf32>
    %486 = vector.broadcast %485 : vector<8x1xf32> to vector<8x256xf32>
    %487 = arith.mulf %486, %299 : vector<8x256xf32>
    %488 = arith.addf %483, %487 : vector<8x256xf32>
    %c30_253 = arith.constant 30 : index
    %c0_254 = arith.constant 0 : index
    %c0_255 = arith.constant 0 : index
    %489 = vector.load %arg6[%c30_253, %c0_254, %c0_255] : memref<36x8x1xf32, #tpu.memory_space<vmem>>, vector<1x8x1xf32>
    %490 = vector.shape_cast %489 : vector<1x8x1xf32> to vector<8x1xf32>
    %491 = vector.broadcast %490 : vector<8x1xf32> to vector<8x256xf32>
    %492 = arith.mulf %491, %289 : vector<8x256xf32>
    %493 = arith.addf %488, %492 : vector<8x256xf32>
    %c31_256 = arith.constant 31 : index
    %c0_257 = arith.constant 0 : index
    %c0_258 = arith.constant 0 : index
    %494 = vector.load %arg6[%c31_256, %c0_257, %c0_258] : memref<36x8x1xf32, #tpu.memory_space<vmem>>, vector<1x8x1xf32>
    %495 = vector.shape_cast %494 : vector<1x8x1xf32> to vector<8x1xf32>
    %496 = vector.broadcast %495 : vector<8x1xf32> to vector<8x256xf32>
    %497 = arith.mulf %496, %286 : vector<8x256xf32>
    %498 = arith.addf %493, %497 : vector<8x256xf32>
    %c32_259 = arith.constant 32 : index
    %c0_260 = arith.constant 0 : index
    %c0_261 = arith.constant 0 : index
    %499 = vector.load %arg6[%c32_259, %c0_260, %c0_261] : memref<36x8x1xf32, #tpu.memory_space<vmem>>, vector<1x8x1xf32>
    %500 = vector.shape_cast %499 : vector<1x8x1xf32> to vector<8x1xf32>
    %501 = vector.broadcast %500 : vector<8x1xf32> to vector<8x256xf32>
    %502 = arith.mulf %501, %290 : vector<8x256xf32>
    %503 = arith.addf %498, %502 : vector<8x256xf32>
    %c33_262 = arith.constant 33 : index
    %c0_263 = arith.constant 0 : index
    %c0_264 = arith.constant 0 : index
    %504 = vector.load %arg6[%c33_262, %c0_263, %c0_264] : memref<36x8x1xf32, #tpu.memory_space<vmem>>, vector<1x8x1xf32>
    %505 = vector.shape_cast %504 : vector<1x8x1xf32> to vector<8x1xf32>
    %506 = vector.broadcast %505 : vector<8x1xf32> to vector<8x256xf32>
    %507 = arith.mulf %506, %302 : vector<8x256xf32>
    %508 = arith.addf %503, %507 : vector<8x256xf32>
    %c34_265 = arith.constant 34 : index
    %c0_266 = arith.constant 0 : index
    %c0_267 = arith.constant 0 : index
    %509 = vector.load %arg6[%c34_265, %c0_266, %c0_267] : memref<36x8x1xf32, #tpu.memory_space<vmem>>, vector<1x8x1xf32>
    %510 = vector.shape_cast %509 : vector<1x8x1xf32> to vector<8x1xf32>
    %511 = vector.broadcast %510 : vector<8x1xf32> to vector<8x256xf32>
    %512 = arith.mulf %511, %305 : vector<8x256xf32>
    %513 = arith.addf %508, %512 : vector<8x256xf32>
    %c35_268 = arith.constant 35 : index
    %c0_269 = arith.constant 0 : index
    %c0_270 = arith.constant 0 : index
    %514 = vector.load %arg6[%c35_268, %c0_269, %c0_270] : memref<36x8x1xf32, #tpu.memory_space<vmem>>, vector<1x8x1xf32>
    %515 = vector.shape_cast %514 : vector<1x8x1xf32> to vector<8x1xf32>
    %516 = vector.broadcast %515 : vector<8x1xf32> to vector<8x256xf32>
    %517 = arith.mulf %516, %308 : vector<8x256xf32>
    %518 = arith.addf %513, %517 : vector<8x256xf32>
    %c3_i32_271 = arith.constant 3 : i32
    %519 = tpu.dynamic_rotate %518 by %c3_i32_271 dim 0 : vector<8x256xf32>, i32 -> vector<8x256xf32>
    %c2_i32_272 = arith.constant 2 : i32
    %520 = tpu.dynamic_rotate %518 by %c2_i32_272 dim 0 : vector<8x256xf32>, i32 -> vector<8x256xf32>
    %521 = arith.addf %519, %520 : vector<8x256xf32>
    %c1_i32_273 = arith.constant 1 : i32
    %522 = tpu.dynamic_rotate %518 by %c1_i32_273 dim 0 : vector<8x256xf32>, i32 -> vector<8x256xf32>
    %523 = arith.addf %521, %522 : vector<8x256xf32>
    %524 = arith.addf %523, %518 : vector<8x256xf32>
    %c3_274 = arith.constant 3 : index
    %c0_275 = arith.constant 0 : index
    %c0_276 = arith.constant 0 : index
    %525 = vector.load %arg2[%c3_274, %c0_275, %c0_276] : memref<4x8x1xf32, #tpu.memory_space<vmem>>, vector<1x8x1xf32>
    %526 = vector.shape_cast %525 : vector<1x8x1xf32> to vector<8x1xf32>
    %527 = vector.broadcast %526 : vector<8x1xf32> to vector<8x256xf32>
    %528 = arith.mulf %527, %524 : vector<8x256xf32>
    %529 = arith.addf %474, %528 : vector<8x256xf32>
    %cst_277 = arith.constant dense<0.000000e+00> : vector<8xf32>
    %530 = vector.multi_reduction <add>, %529, %cst_277 [1] : vector<8x256xf32> to vector<8xf32>
    %531 = vector.shape_cast %530 : vector<8xf32> to vector<8x1xf32>
    %c4_i32_278 = arith.constant 4 : i32
    %532 = tpu.dynamic_rotate %531 by %c4_i32_278 dim 0 : vector<8x1xf32>, i32 -> vector<8x1xf32>
    %533 = arith.addf %531, %532 : vector<8x1xf32>
    %cst_279 = arith.constant 0.001953125 : f32
    %534 = vector.broadcast %cst_279 : f32 to vector<8x1xf32>
    %535 = arith.mulf %533, %534 : vector<8x1xf32>
    %536 = vector.broadcast %535 : vector<8x1xf32> to vector<8x256xf32>
    %537 = arith.subf %529, %536 : vector<8x256xf32>
    %538 = arith.mulf %537, %537 : vector<8x256xf32>
    %cst_280 = arith.constant dense<0.000000e+00> : vector<8xf32>
    %539 = vector.multi_reduction <add>, %538, %cst_280 [1] : vector<8x256xf32> to vector<8xf32>
    %540 = vector.shape_cast %539 : vector<8xf32> to vector<8x1xf32>
    %c4_i32_281 = arith.constant 4 : i32
    %541 = tpu.dynamic_rotate %540 by %c4_i32_281 dim 0 : vector<8x1xf32>, i32 -> vector<8x1xf32>
    %542 = arith.addf %540, %541 : vector<8x1xf32>
    %cst_282 = arith.constant 0.001953125 : f32
    %543 = vector.broadcast %cst_282 : f32 to vector<8x1xf32>
    %544 = arith.mulf %542, %543 : vector<8x1xf32>
    %cst_283 = arith.constant 9.99999974E-6 : f32
    %545 = vector.broadcast %cst_283 : f32 to vector<8x1xf32>
    %546 = arith.addf %544, %545 : vector<8x1xf32>
    %547 = math.rsqrt %546 : vector<8x1xf32>
    %c0_284 = arith.constant 0 : index
    %c0_285 = arith.constant 0 : index
    %548 = vector.load %arg7[%c0_284, %c0_285] : memref<8x1xf32, #tpu.memory_space<vmem>>, vector<8x1xf32>
    %549 = arith.mulf %547, %548 : vector<8x1xf32>
    %550 = vector.broadcast %549 : vector<8x1xf32> to vector<8x256xf32>
    %551 = arith.mulf %537, %550 : vector<8x256xf32>
    %c0_286 = arith.constant 0 : index
    %c0_287 = arith.constant 0 : index
    %552 = vector.load %arg8[%c0_286, %c0_287] : memref<8x1xf32, #tpu.memory_space<vmem>>, vector<8x1xf32>
    %553 = vector.broadcast %552 : vector<8x1xf32> to vector<8x256xf32>
    %554 = arith.addf %551, %553 : vector<8x256xf32>
    %555 = arith.addf %554, %0 : vector<8x256xf32>
    %cst_288 = arith.constant 0.000000e+00 : f32
    %556 = vector.broadcast %cst_288 : f32 to vector<8x256xf32>
    %557 = arith.maximumf %555, %556 : vector<8x256xf32>
    %c0_289 = arith.constant 0 : index
    %c0_290 = arith.constant 0 : index
    %558 = vector.load %arg9[%c0_289, %c0_290] : memref<8x256xf32, #tpu.memory_space<vmem>>, vector<8x256xf32>
    tpu.vector_store %arg9[%c0_289, %c0_290], %557 {strides = array<i32>} : memref<8x256xf32, #tpu.memory_space<vmem>>, vector<8x256xf32>,
    return
  }
}

</mosaic_0001>

<llo_original>
// kernel: tpu_custom_call.1
$region0: #{tpu_custom_call.1}
  #allocation0 [shape = 'u32[]', space=smem, size = 0x4, offset = 0x4, fixed_abs, tag = 'smem constant byte address 0x4 - core index']
  #allocation1 [shape = 'u32[72,128]{1,0:T(1,128)}', space=vmem, size = 0x9000, scoped, tag = 'internal scratch']
  %s0 = inlined_call_operand.vmem [shape: f32[8,256], index: 0, kind: input, shape index: {}]
  %s1 = inlined_call_operand.vmem [shape: f32[4,8,256], index: 1, kind: input, shape index: {}]
  %s2 = inlined_call_operand.vmem [shape: f32[4,8,1], index: 2, kind: input, shape index: {}]
  %s3 = inlined_call_operand.vmem [shape: f32[36,8,1], index: 3, kind: input, shape index: {}]
  %s4 = inlined_call_operand.vmem [shape: f32[8,1], index: 4, kind: input, shape index: {}]
  %s5 = inlined_call_operand.vmem [shape: f32[8,1], index: 5, kind: input, shape index: {}]
  %s6 = inlined_call_operand.vmem [shape: f32[36,8,1], index: 6, kind: input, shape index: {}]
  %s7 = inlined_call_operand.vmem [shape: f32[8,1], index: 7, kind: input, shape index: {}]
  %s8 = inlined_call_operand.vmem [shape: f32[8,1], index: 8, kind: input, shape index: {}]
  %s9 = inlined_call_operand.hbm [shape: f32[8,256], index: 9, kind: output, shape index: {}]
  %s10 = sld [smem:[#allocation0]]
  $region46: #{tpu_custom_call.1} parent=0
    _
  %s12 = ssub.s32 1, %s10
  %s13 = scalar_select 0, %s12, %s10
  $region1: #{tpu_custom_call.1} parent=0
    #allocation2 [shape = 'u8[8192]{0}', space=vmem, size = 0x2000, scoped, tag = 'output window, operand 0, single buffered']
    #allocation3 [shape = 's32[1]{0}', space=sflag, size = 0x4, scoped, tag = 'scoped memory for tpu_custom_call.1']
    %14 = vsyncpa [#allocation3], 0
    // Predicated region
    $region2: #{tpu_custom_call.1} parent=1 // pred_check
      _
    $region3: #{tpu_custom_call.1} parent=1 // pred_check_branch
      %16 = sbr.rel (0) target = $region5
    $region4: #{tpu_custom_call.1} parent=1 // pred_region
      _
    $region5: #{tpu_custom_call.1} parent=1 // pred_fallthru
      _
    // Predicated region
    $region6: #{tpu_custom_call.1} parent=1 // pred_check
      _
    $region7: #{tpu_custom_call.1} parent=1 // pred_check_branch
      %18 = sbr.rel (0) target = $region9
    $region8: #{tpu_custom_call.1} parent=1 // pred_region
      _
    $region9: #{tpu_custom_call.1} parent=1 // pred_fallthru
      _
    // Predicated region
    $region10: #{tpu_custom_call.1} parent=1 // pred_check
      _
    $region11: #{tpu_custom_call.1} parent=1 // pred_check_branch
      %20 = sbr.rel (0) target = $region13
    $region12: #{tpu_custom_call.1} parent=1 // pred_region
      _
    $region13: #{tpu_custom_call.1} parent=1 // pred_fallthru
      _
    // Predicated region
    $region14: #{tpu_custom_call.1} parent=1 // pred_check
      _
    $region15: #{tpu_custom_call.1} parent=1 // pred_check_branch
      %22 = sbr.rel (0) target = $region17
    $region16: #{tpu_custom_call.1} parent=1 // pred_region
      _
    $region17: #{tpu_custom_call.1} parent=1 // pred_fallthru
      _
    // Predicated region
    $region18: #{tpu_custom_call.1} parent=1 // pred_check
      _
    $region19: #{tpu_custom_call.1} parent=1 // pred_check_branch
      %24 = sbr.rel (0) target = $region21
    $region20: #{tpu_custom_call.1} parent=1 // pred_region
      _
    $region21: #{tpu_custom_call.1} parent=1 // pred_fallthru
      _
    // Predicated region
    $region22: #{tpu_custom_call.1} parent=1 // pred_check
      _
    $region23: #{tpu_custom_call.1} parent=1 // pred_check_branch
      %26 = sbr.rel (0) target = $region25
    $region24: #{tpu_custom_call.1} parent=1 // pred_region
      _
    $region25: #{tpu_custom_call.1} parent=1 // pred_fallthru
      _
    // Predicated region
    $region26: #{tpu_custom_call.1} parent=1 // pred_check
      _
    $region27: #{tpu_custom_call.1} parent=1 // pred_check_branch
      %28 = sbr.rel (0) target = $region29
    $region28: #{tpu_custom_call.1} parent=1 // pred_region
      _
    $region29: #{tpu_custom_call.1} parent=1 // pred_fallthru
      _
    // Predicated region
    $region30: #{tpu_custom_call.1} parent=1 // pred_check
      _
    $region31: #{tpu_custom_call.1} parent=1 // pred_check_branch
      %30 = sbr.rel (0) target = $region33
    $region32: #{tpu_custom_call.1} parent=1 // pred_region
      _
    $region33: #{tpu_custom_call.1} parent=1 // pred_fallthru
      _
    // Predicated region
    $region34: #{tpu_custom_call.1} parent=1 // pred_check
      _
    $region35: #{tpu_custom_call.1} parent=1 // pred_check_branch
      %32 = sbr.rel (0) target = $region37
    $region36: #{tpu_custom_call.1} parent=1 // pred_region
      _
    $region37: #{tpu_custom_call.1} parent=1 // pred_fallthru
      _
    %v33 = vld [vmem:[%s0] sm:$0xff]
    %v34 = vld [vmem:[%s0 + $0x8] sm:$0xff]
    %v35 = vld [vmem:[%s1] sm:$0xff]
    %v36 = vld [vmem:[%s1 + $0x8] sm:$0xff]
    %vm37 = vcmp.gt.f32.partialorder %v35, 0.5
    %vm38 = vcmp.gt.f32.partialorder %v36, 0.5
    %s39 = scalar_lea.vmem %s1, 16
    %v40 = vld [vmem:[%s39] sm:$0xff]
    %v41 = vld [vmem:[%s39 + $0x8] sm:$0xff]
    %vm42 = vcmp.gt.f32.partialorder %v40, 0.5
    %vm43 = vcmp.gt.f32.partialorder %v41, 0.5
    %s44 = scalar_lea.vmem %s1, 32
    %v45 = vld [vmem:[%s44] sm:$0xff]
    %v46 = vld [vmem:[%s44 + $0x8] sm:$0xff]
    %vm47 = vcmp.gt.f32.partialorder %v45, 0.5
    %vm48 = vcmp.gt.f32.partialorder %v46, 0.5
    %s49 = scalar_lea.vmem %s1, 48
    %v50 = vld [vmem:[%s49] sm:$0xff]
    %v51 = vld [vmem:[%s49 + $0x8] sm:$0xff]
    %vm52 = vcmp.gt.f32.partialorder %v50, 0.5
    %vm53 = vcmp.gt.f32.partialorder %v51, 0.5
    %54 = vrot.lane.b32.xlu0 %v33, 127
    %v55 = vpop.permute.xlu0 %54
    %56 = vrot.lane.b32.xlu0 %v34, 127
    %v57 = vpop.permute.xlu0 %56
    %v58 = vlaneseq
    %v59 = vand.u32 %v58, 127
    %vm60 = vcmp.lt.s32.totalorder %v59, 127
    %v61 = vsel %vm60, %v55, %v57
    %v62 = vsel %vm60, %v57, %v55
    %63 = vrot.lane.b32.xlu0 %v33, 1
    %v64 = vpop.permute.xlu0 %63
    %65 = vrot.lane.b32.xlu0 %v34, 1
    %v66 = vpop.permute.xlu0 %65
    %vm67 = vcmp.lt.s32.totalorder %v59, 1
    %v68 = vsel %vm67, %v64, %v66
    %v69 = vsel %vm67, %v66, %v64
    %v70 = vsel %vm37, %v61, %v69
    %v71 = vsel %vm38, %v62, %v68
    %v72 = vsel %vm42, %v69, %v61
    %v73 = vsel %vm43, %v68, %v62
    %74 = vrot.lane.b32.xlu0 %v70, 112
    %v75 = vpop.permute.xlu0 %74
    %76 = vrot.lane.b32.xlu0 %v71, 112
    %v77 = vpop.permute.xlu0 %76
    %vm78 = vcmp.lt.s32.totalorder %v59, 112
    %v79 = vsel %vm78, %v75, %v77
    %v80 = vsel %vm78, %v77, %v75
    %81 = vrot.lane.b32.xlu0 %v70, 16
    %v82 = vpop.permute.xlu0 %81
    %83 = vrot.lane.b32.xlu0 %v71, 16
    %v84 = vpop.permute.xlu0 %83
    %vm85 = vcmp.lt.s32.totalorder %v59, 16
    %v86 = vsel %vm85, %v82, %v84
    %v87 = vsel %vm85, %v84, %v82
    %v88 = vsel %vm47, %v79, %v87
    %v89 = vsel %vm48, %v80, %v86
    %90 = vrot.lane.b32.xlu0 %v33, 112
    %v91 = vpop.permute.xlu0 %90
    %92 = vrot.lane.b32.xlu0 %v34, 112
    %v93 = vpop.permute.xlu0 %92
    %v94 = vsel %vm78, %v91, %v93
    %v95 = vsel %vm78, %v93, %v91
    %96 = vrot.lane.b32.xlu0 %v33, 16
    %v97 = vpop.permute.xlu0 %96
    %98 = vrot.lane.b32.xlu0 %v34, 16
    %v99 = vpop.permute.xlu0 %98
    %v100 = vsel %vm85, %v97, %v99
    %v101 = vsel %vm85, %v99, %v97
    %v102 = vsel %vm47, %v94, %v101
    %v103 = vsel %vm48, %v95, %v100
    %104 = vrot.lane.b32.xlu0 %v72, 112
    %v105 = vpop.permute.xlu0 %104
    %106 = vrot.lane.b32.xlu0 %v73, 112
    %v107 = vpop.permute.xlu0 %106
    %v108 = vsel %vm78, %v105, %v107
    %v109 = vsel %vm78, %v107, %v105
    %110 = vrot.lane.b32.xlu0 %v72, 16
    %v111 = vpop.permute.xlu0 %110
    %112 = vrot.lane.b32.xlu0 %v73, 16
    %v113 = vpop.permute.xlu0 %112
    %v114 = vsel %vm85, %v111, %v113
    %v115 = vsel %vm85, %v113, %v111
    %v116 = vsel %vm47, %v108, %v115
    %v117 = vsel %vm48, %v109, %v114
    %v118 = vsel %vm52, %v87, %v79
    %v119 = vsel %vm53, %v86, %v80
    %v120 = vsel %vm52, %v101, %v94
    %v121 = vsel %vm53, %v100, %v95
    %v122 = vsel %vm52, %v115, %v108
    %v123 = vsel %vm53, %v114, %v109
    %v124 = vld [vmem:[%s3] sm:$0xff]
    %126 = vset.pattern.permute.xlu0 0
    %127 = vperm.xlu0 %126, %v124
    %v128 = vpop.permute.xlu0 %127
    %v130 = vmul.f32 %v128, %v88
    %v131 = vmul.f32 %v128, %v89
    %s132 = scalar_lea.vmem %s3, 8
    %v133 = vld [vmem:[%s132] sm:$0xff]
    %135 = vset.pattern.permute.xlu0 0
    %136 = vperm.xlu0 %135, %v133
    %v137 = vpop.permute.xlu0 %136
    %v139 = vmul.f32 %v137, %v102
    %v140 = vmul.f32 %v137, %v103
    %v141 = vadd.f32 %v130, %v139
    %v142 = vadd.f32 %v131, %v140
    %s143 = scalar_lea.vmem %s3, 16
    %v144 = vld [vmem:[%s143] sm:$0xff]
    %146 = vset.pattern.permute.xlu0 0
    %147 = vperm.xlu0 %146, %v144
    %v148 = vpop.permute.xlu0 %147
    %v150 = vmul.f32 %v148, %v116
    %v151 = vmul.f32 %v148, %v117
    %v152 = vadd.f32 %v141, %v150
    %v153 = vadd.f32 %v142, %v151
    %s154 = scalar_lea.vmem %s3, 24
    %v155 = vld [vmem:[%s154] sm:$0xff]
    %157 = vset.pattern.permute.xlu0 0
    %158 = vperm.xlu0 %157, %v155
    %v159 = vpop.permute.xlu0 %158
    %v161 = vmul.f32 %v159, %v70
    %v162 = vmul.f32 %v159, %v71
    %v163 = vadd.f32 %v152, %v161
    %v164 = vadd.f32 %v153, %v162
    %s165 = scalar_lea.vmem %s3, 32
    %v166 = vld [vmem:[%s165] sm:$0xff]
    %168 = vset.pattern.permute.xlu0 0
    %169 = vperm.xlu0 %168, %v166
    %v170 = vpop.permute.xlu0 %169
    %v172 = vmul.f32 %v170, %v33
    %v173 = vmul.f32 %v170, %v34
    %v174 = vadd.f32 %v163, %v172
    %v175 = vadd.f32 %v164, %v173
    %s176 = scalar_lea.vmem %s3, 40
    %v177 = vld [vmem:[%s176] sm:$0xff]
    %179 = vset.pattern.permute.xlu0 0
    %180 = vperm.xlu0 %179, %v177
    %v181 = vpop.permute.xlu0 %180
    %v183 = vmul.f32 %v181, %v72
    %v184 = vmul.f32 %v181, %v73
    %v185 = vadd.f32 %v174, %v183
    %v186 = vadd.f32 %v175, %v184
    %s187 = scalar_lea.vmem %s3, 48
    %v188 = vld [vmem:[%s187] sm:$0xff]
    %190 = vset.pattern.permute.xlu0 0
    %191 = vperm.xlu0 %190, %v188
    %v192 = vpop.permute.xlu0 %191
    %v194 = vmul.f32 %v192, %v118
    %v195 = vmul.f32 %v192, %v119
    %v196 = vadd.f32 %v185, %v194
    %v197 = vadd.f32 %v186, %v195
    %s198 = scalar_lea.vmem %s3, 56
    %v199 = vld [vmem:[%s198] sm:$0xff]
    %201 = vset.pattern.permute.xlu0 0
    %202 = vperm.xlu0 %201, %v199
    %v203 = vpop.permute.xlu0 %202
    %v205 = vmul.f32 %v203, %v120
    %v206 = vmul.f32 %v203, %v121
    %v207 = vadd.f32 %v196, %v205
    %v208 = vadd.f32 %v197, %v206
    %s209 = scalar_lea.vmem %s3, 64
    %v210 = vld [vmem:[%s209] sm:$0xff]
    %212 = vset.pattern.permute.xlu0 0
    %213 = vperm.xlu0 %212, %v210
    %v214 = vpop.permute.xlu0 %213
    %v216 = vmul.f32 %v214, %v122
    %v217 = vmul.f32 %v214, %v123
    %v218 = vadd.f32 %v207, %v216
    %v219 = vadd.f32 %v208, %v217
    %v220 = vrot.slane %v218, 1
    %v221 = vrot.slane %v219, 1
    %v222 = vadd.f32 %v218, %v220
    %v223 = vadd.f32 %v219, %v221
    %v224 = vrot.slane %v218, 2
    %v225 = vrot.slane %v219, 2
    %v226 = vadd.f32 %v222, %v224
    %v227 = vadd.f32 %v223, %v225
    %v228 = vrot.slane %v218, 3
    %v229 = vrot.slane %v219, 3
    %v230 = vadd.f32 %v226, %v228
    %v231 = vadd.f32 %v227, %v229
    %v232 = vld [vmem:[%s2] sm:$0xff]
    %234 = vset.pattern.permute.xlu0 0
    %235 = vperm.xlu0 %234, %v232
    %v236 = vpop.permute.xlu0 %235
    %v238 = vmul.f32 %v236, %v230
    %v239 = vmul.f32 %v236, %v231
    %v240 = vadd.f32 %v238, 0.0
    %v241 = vadd.f32 %v239, 0.0
    %s242 = scalar_lea.vmem %s3, 72
    %v243 = vld [vmem:[%s242] sm:$0xff]
    %245 = vset.pattern.permute.xlu0 0
    %246 = vperm.xlu0 %245, %v243
    %v247 = vpop.permute.xlu0 %246
    %v249 = vmul.f32 %v247, %v88
    %v250 = vmul.f32 %v247, %v89
    %s251 = scalar_lea.vmem %s3, 80
    %v252 = vld [vmem:[%s251] sm:$0xff]
    %254 = vset.pattern.permute.xlu0 0
    %255 = vperm.xlu0 %254, %v252
    %v256 = vpop.permute.xlu0 %255
    %v258 = vmul.f32 %v256, %v102
    %v259 = vmul.f32 %v256, %v103
    %v260 = vadd.f32 %v249, %v258
    %v261 = vadd.f32 %v250, %v259
    %s262 = scalar_lea.vmem %s3, 88
    %v263 = vld [vmem:[%s262] sm:$0xff]
    %265 = vset.pattern.permute.xlu0 0
    %266 = vperm.xlu0 %265, %v263
    %v267 = vpop.permute.xlu0 %266
    %v269 = vmul.f32 %v267, %v116
    %v270 = vmul.f32 %v267, %v117
    %v271 = vadd.f32 %v260, %v269
    %v272 = vadd.f32 %v261, %v270
    %s273 = scalar_lea.vmem %s3, 96
    %v274 = vld [vmem:[%s273] sm:$0xff]
    %276 = vset.pattern.permute.xlu0 0
    %277 = vperm.xlu0 %276, %v274
    %v278 = vpop.permute.xlu0 %277
    %v280 = vmul.f32 %v278, %v70
    %v281 = vmul.f32 %v278, %v71
    %v282 = vadd.f32 %v271, %v280
    %v283 = vadd.f32 %v272, %v281
    %s284 = scalar_lea.vmem %s3, 104
    %v285 = vld [vmem:[%s284] sm:$0xff]
    %287 = vset.pattern.permute.xlu0 0
    %288 = vperm.xlu0 %287, %v285
    %v289 = vpop.permute.xlu0 %288
    %v291 = vmul.f32 %v289, %v33
    %v292 = vmul.f32 %v289, %v34
    %v293 = vadd.f32 %v282, %v291
    %v294 = vadd.f32 %v283, %v292
    %s295 = scalar_lea.vmem %s3, 112
    %v296 = vld [vmem:[%s295] sm:$0xff]
    %298 = vset.pattern.permute.xlu0 0
    %299 = vperm.xlu0 %298, %v296
    %v300 = vpop.permute.xlu0 %299
    %v302 = vmul.f32 %v300, %v72
    %v303 = vmul.f32 %v300, %v73
    %v304 = vadd.f32 %v293, %v302
    %v305 = vadd.f32 %v294, %v303
    %s306 = scalar_lea.vmem %s3, 120
    %v307 = vld [vmem:[%s306] sm:$0xff]
    %309 = vset.pattern.permute.xlu0 0
    %310 = vperm.xlu0 %309, %v307
    %v311 = vpop.permute.xlu0 %310
    %v313 = vmul.f32 %v311, %v118
    %v314 = vmul.f32 %v311, %v119
    %v315 = vadd.f32 %v304, %v313
    %v316 = vadd.f32 %v305, %v314
    %s317 = scalar_lea.vmem %s3, 128
    %v318 = vld [vmem:[%s317] sm:$0xff]
    %320 = vset.pattern.permute.xlu0 0
    %321 = vperm.xlu0 %320, %v318
    %v322 = vpop.permute.xlu0 %321
    %v324 = vmul.f32 %v322, %v120
    %v325 = vmul.f32 %v322, %v121
    %v326 = vadd.f32 %v315, %v324
    %v327 = vadd.f32 %v316, %v325
    %s328 = scalar_lea.vmem %s3, 136
    %v329 = vld [vmem:[%s328] sm:$0xff]
    %331 = vset.pattern.permute.xlu0 0
    %332 = vperm.xlu0 %331, %v329
    %v333 = vpop.permute.xlu0 %332
    %v335 = vmul.f32 %v333, %v122
    %v336 = vmul.f32 %v333, %v123
    %v337 = vadd.f32 %v326, %v335
    %v338 = vadd.f32 %v327, %v336
    %v339 = vrot.slane %v337, 7
    %v340 = vrot.slane %v338, 7
    %v341 = vadd.f32 %v339, %v337
    %v342 = vadd.f32 %v340, %v338
    %v343 = vrot.slane %v337, 1
    %v344 = vrot.slane %v338, 1
    %v345 = vadd.f32 %v341, %v343
    %v346 = vadd.f32 %v342, %v344
    %v347 = vrot.slane %v337, 2
    %v348 = vrot.slane %v338, 2
    %v349 = vadd.f32 %v345, %v347
    %v350 = vadd.f32 %v346, %v348
    %s351 = scalar_lea.vmem %s2, 8
    %v352 = vld [vmem:[%s351] sm:$0xff]
    %354 = vset.pattern.permute.xlu0 0
    %355 = vperm.xlu0 %354, %v352
    %v356 = vpop.permute.xlu0 %355
    %v358 = vmul.f32 %v356, %v349
    %v359 = vmul.f32 %v356, %v350
    %v360 = vadd.f32 %v240, %v358
    %v361 = vadd.f32 %v241, %v359
    %s362 = scalar_lea.vmem %s3, 144
    %v363 = vld [vmem:[%s362] sm:$0xff]
    %365 = vset.pattern.permute.xlu0 0
    %366 = vperm.xlu0 %365, %v363
    %v367 = vpop.permute.xlu0 %366
    %v369 = vmul.f32 %v367, %v88
    %v370 = vmul.f32 %v367, %v89
    %s371 = scalar_lea.vmem %s3, 152
    %v372 = vld [vmem:[%s371] sm:$0xff]
    %374 = vset.pattern.permute.xlu0 0
    %375 = vperm.xlu0 %374, %v372
    %v376 = vpop.permute.xlu0 %375
    %v378 = vmul.f32 %v376, %v102
    %v379 = vmul.f32 %v376, %v103
    %v380 = vadd.f32 %v369, %v378
    %v381 = vadd.f32 %v370, %v379
    %s382 = scalar_lea.vmem %s3, 160
    %v383 = vld [vmem:[%s382] sm:$0xff]
    %385 = vset.pattern.permute.xlu0 0
    %386 = vperm.xlu0 %385, %v383
    %v387 = vpop.permute.xlu0 %386
    %v389 = vmul.f32 %v387, %v116
    %v390 = vmul.f32 %v387, %v117
    %v391 = vadd.f32 %v380, %v389
    %v392 = vadd.f32 %v381, %v390
    %s393 = scalar_lea.vmem %s3, 168
    %v394 = vld [vmem:[%s393] sm:$0xff]
    %396 = vset.pattern.permute.xlu0 0
    %397 = vperm.xlu0 %396, %v394
    %v398 = vpop.permute.xlu0 %397
    %v400 = vmul.f32 %v398, %v70
    %v401 = vmul.f32 %v398, %v71
    %v402 = vadd.f32 %v391, %v400
    %v403 = vadd.f32 %v392, %v401
    %s404 = scalar_lea.vmem %s3, 176
    %v405 = vld [vmem:[%s404] sm:$0xff]
    %407 = vset.pattern.permute.xlu0 0
    %408 = vperm.xlu0 %407, %v405
    %v409 = vpop.permute.xlu0 %408
    %v411 = vmul.f32 %v409, %v33
    %v412 = vmul.f32 %v409, %v34
    %v413 = vadd.f32 %v402, %v411
    %v414 = vadd.f32 %v403, %v412
    %s415 = scalar_lea.vmem %s3, 184
    %v416 = vld [vmem:[%s415] sm:$0xff]
    %418 = vset.pattern.permute.xlu0 0
    %419 = vperm.xlu0 %418, %v416
    %v420 = vpop.permute.xlu0 %419
    %v422 = vmul.f32 %v420, %v72
    %v423 = vmul.f32 %v420, %v73
    %v424 = vadd.f32 %v413, %v422
    %v425 = vadd.f32 %v414, %v423
    %s426 = scalar_lea.vmem %s3, 192
    %v427 = vld [vmem:[%s426] sm:$0xff]
    %429 = vset.pattern.permute.xlu0 0
    %430 = vperm.xlu0 %429, %v427
    %v431 = vpop.permute.xlu0 %430
    %v433 = vmul.f32 %v431, %v118
    %v434 = vmul.f32 %v431, %v119
    %v435 = vadd.f32 %v424, %v433
    %v436 = vadd.f32 %v425, %v434
    %s437 = scalar_lea.vmem %s3, 200
    %v438 = vld [vmem:[%s437] sm:$0xff]
    %440 = vset.pattern.permute.xlu0 0
    %441 = vperm.xlu0 %440, %v438
    %v442 = vpop.permute.xlu0 %441
    %v444 = vmul.f32 %v442, %v120
    %v445 = vmul.f32 %v442, %v121
    %v446 = vadd.f32 %v435, %v444
    %v447 = vadd.f32 %v436, %v445
    %s448 = scalar_lea.vmem %s3, 208
    %v449 = vld [vmem:[%s448] sm:$0xff]
    %451 = vset.pattern.permute.xlu0 0
    %452 = vperm.xlu0 %451, %v449
    %v453 = vpop.permute.xlu0 %452
    %v455 = vmul.f32 %v453, %v122
    %v456 = vmul.f32 %v453, %v123
    %v457 = vadd.f32 %v446, %v455
    %v458 = vadd.f32 %v447, %v456
    %v459 = vrot.slane %v457, 6
    %v460 = vrot.slane %v458, 6
    %v461 = vrot.slane %v457, 7
    %v462 = vrot.slane %v458, 7
    %v463 = vadd.f32 %v459, %v461
    %v464 = vadd.f32 %v460, %v462
    %v465 = vadd.f32 %v463, %v457
    %v466 = vadd.f32 %v464, %v458
    %v467 = vrot.slane %v457, 1
    %v468 = vrot.slane %v458, 1
    %v469 = vadd.f32 %v465, %v467
    %v470 = vadd.f32 %v466, %v468
    %s471 = scalar_lea.vmem %s2, 16
    %v472 = vld [vmem:[%s471] sm:$0xff]
    %474 = vset.pattern.permute.xlu0 0
    %475 = vperm.xlu0 %474, %v472
    %v476 = vpop.permute.xlu0 %475
    %v478 = vmul.f32 %v476, %v469
    %v479 = vmul.f32 %v476, %v470
    %v480 = vadd.f32 %v360, %v478
    %v481 = vadd.f32 %v361, %v479
    %s482 = scalar_lea.vmem %s3, 216
    %v483 = vld [vmem:[%s482] sm:$0xff]
    %485 = vset.pattern.permute.xlu0 0
    %486 = vperm.xlu0 %485, %v483
    %v487 = vpop.permute.xlu0 %486
    %v489 = vmul.f32 %v487, %v88
    %v490 = vmul.f32 %v487, %v89
    %s491 = scalar_lea.vmem %s3, 224
    %v492 = vld [vmem:[%s491] sm:$0xff]
    %494 = vset.pattern.permute.xlu0 0
    %495 = vperm.xlu0 %494, %v492
    %v496 = vpop.permute.xlu0 %495
    %v498 = vmul.f32 %v496, %v102
    %v499 = vmul.f32 %v496, %v103
    %v500 = vadd.f32 %v489, %v498
    %v501 = vadd.f32 %v490, %v499
    %s502 = scalar_lea.vmem %s3, 232
    %v503 = vld [vmem:[%s502] sm:$0xff]
    %505 = vset.pattern.permute.xlu0 0
    %506 = vperm.xlu0 %505, %v503
    %v507 = vpop.permute.xlu0 %506
    %v509 = vmul.f32 %v507, %v116
    %v510 = vmul.f32 %v507, %v117
    %v511 = vadd.f32 %v500, %v509
    %v512 = vadd.f32 %v501, %v510
    %s513 = scalar_lea.vmem %s3, 240
    %v514 = vld [vmem:[%s513] sm:$0xff]
    %516 = vset.pattern.permute.xlu0 0
    %517 = vperm.xlu0 %516, %v514
    %v518 = vpop.permute.xlu0 %517
    %v520 = vmul.f32 %v518, %v70
    %v521 = vmul.f32 %v518, %v71
    %v522 = vadd.f32 %v511, %v520
    %v523 = vadd.f32 %v512, %v521
    %s524 = scalar_lea.vmem %s3, 248
    %v525 = vld [vmem:[%s524] sm:$0xff]
    %527 = vset.pattern.permute.xlu0 0
    %528 = vperm.xlu0 %527, %v525
    %v529 = vpop.permute.xlu0 %528
    %v531 = vmul.f32 %v529, %v33
    %v532 = vmul.f32 %v529, %v34
    %v533 = vadd.f32 %v522, %v531
    %v534 = vadd.f32 %v523, %v532
    %s535 = scalar_lea.vmem %s3, 256
    %v536 = vld [vmem:[%s535] sm:$0xff]
    %538 = vset.pattern.permute.xlu0 0
    %539 = vperm.xlu0 %538, %v536
    %v540 = vpop.permute.xlu0 %539
    %v542 = vmul.f32 %v540, %v72
    %v543 = vmul.f32 %v540, %v73
    %v544 = vadd.f32 %v533, %v542
    %v545 = vadd.f32 %v534, %v543
    %s546 = scalar_lea.vmem %s3, 264
    %v547 = vld [vmem:[%s546] sm:$0xff]
    %549 = vset.pattern.permute.xlu0 0
    %550 = vperm.xlu0 %549, %v547
    %v551 = vpop.permute.xlu0 %550
    %v553 = vmul.f32 %v551, %v118
    %v554 = vmul.f32 %v551, %v119
    %v555 = vadd.f32 %v544, %v553
    %v556 = vadd.f32 %v545, %v554
    %s557 = scalar_lea.vmem %s3, 272
    %v558 = vld [vmem:[%s557] sm:$0xff]
    %560 = vset.pattern.permute.xlu0 0
    %561 = vperm.xlu0 %560, %v558
    %v562 = vpop.permute.xlu0 %561
    %v564 = vmul.f32 %v562, %v120
    %v565 = vmul.f32 %v562, %v121
    %v566 = vadd.f32 %v555, %v564
    %v567 = vadd.f32 %v556, %v565
    %s568 = scalar_lea.vmem %s3, 280
    %v569 = vld [vmem:[%s568] sm:$0xff]
    %571 = vset.pattern.permute.xlu0 0
    %572 = vperm.xlu0 %571, %v569
    %v573 = vpop.permute.xlu0 %572
    %v575 = vmul.f32 %v573, %v122
    %v576 = vmul.f32 %v573, %v123
    %v577 = vadd.f32 %v566, %v575
    %v578 = vadd.f32 %v567, %v576
    %v579 = vrot.slane %v577, 5
    %v580 = vrot.slane %v578, 5
    %v581 = vrot.slane %v577, 6
    %v582 = vrot.slane %v578, 6
    %v583 = vadd.f32 %v579, %v581
    %v584 = vadd.f32 %v580, %v582
    %v585 = vrot.slane %v577, 7
    %v586 = vrot.slane %v578, 7
    %v587 = vadd.f32 %v583, %v585
    %v588 = vadd.f32 %v584, %v586
    %v589 = vadd.f32 %v587, %v577
    %v590 = vadd.f32 %v588, %v578
    %s591 = scalar_lea.vmem %s2, 24
    %v592 = vld [vmem:[%s591] sm:$0xff]
    %594 = vset.pattern.permute.xlu0 0
    %595 = vperm.xlu0 %594, %v592
    %v596 = vpop.permute.xlu0 %595
    %v598 = vmul.f32 %v596, %v589
    %v599 = vmul.f32 %v596, %v590
    %v600 = vadd.f32 %v480, %v598
    %v601 = vadd.f32 %v481, %v599
    %v602 = vadd.f32 %v600, %v601
    %603 = vadd.xlane.f32.xlu0 %v602
    %v604 = vpop.xlane.xlu0 %603
    %v605 = vrot.slane %v604, 4
    %v606 = vadd.f32 %v604, %v605
    %v607 = vmul.f32 %v606, 0.001953125
    %609 = vset.pattern.permute.xlu0 0
    %610 = vperm.xlu0 %609, %v607
    %v611 = vpop.permute.xlu0 %610
    %v613 = vsub.f32 %v600, %v611
    %v614 = vsub.f32 %v601, %v611
    %v615 = vmul.f32 %v613, %v613
    %v616 = vmul.f32 %v614, %v614
    %v617 = vadd.f32 %v615, %v616
    %618 = vadd.xlane.f32.xlu0 %v617
    %v619 = vpop.xlane.xlu0 %618
    %v620 = vrot.slane %v619, 4
    %v621 = vadd.f32 %v619, %v620
    %v622 = vmul.f32 %v621, 0.001953125
    %v623 = vadd.f32 %v622, 1e-05
    %v624 = vrsqrt.pop %v623
    %v625 = vmul.f32 %v624, %v623
    %v626 = vmul.f32 %v625, %v624
    %v627 = vmul.f32 0.5, %v626
    %v628 = vsub.f32 1.5, %v627
    %v629 = vmul.f32 %v624, %v628
    %vm630 = vweird.f32 %v623
    %vm631 = vweird.f32 %v624
    %vm632 = vmor %vm630, %vm631
    %v633 = vsel %vm632, %v624, %v629
    %v634 = vld [vmem:[%s4] sm:$0xff]
    %v635 = vmul.f32 %v633, %v634
    %637 = vset.pattern.permute.xlu0 0
    %638 = vperm.xlu0 %637, %v635
    %v639 = vpop.permute.xlu0 %638
    %v641 = vmul.f32 %v613, %v639
    %v642 = vmul.f32 %v614, %v639
    %v643 = vld [vmem:[%s5] sm:$0xff]
    %645 = vset.pattern.permute.xlu0 0
    %646 = vperm.xlu0 %645, %v643
    %v647 = vpop.permute.xlu0 %646
    %v649 = vadd.f32 %v641, %v647
    %v650 = vadd.f32 %v642, %v647
    %v651 = vmax.f32 %v649, 0.0
    %v652 = vmax.f32 %v650, 0.0
    %653 = vrot.lane.b32.xlu0 %v651, 127
    %v654 = vpop.permute.xlu0 %653
    %655 = vrot.lane.b32.xlu0 %v652, 127
    %v656 = vpop.permute.xlu0 %655
    %v657 = vsel %vm60, %v654, %v656
    %v658 = vsel %vm60, %v656, %v654
    %659 = vrot.lane.b32.xlu0 %v651, 1
    %v660 = vpop.permute.xlu0 %659
    %661 = vrot.lane.b32.xlu0 %v652, 1
    %v662 = vpop.permute.xlu0 %661
    %v663 = vsel %vm67, %v660, %v662
    %v664 = vsel %vm67, %v662, %v660
    %v665 = vsel %vm37, %v657, %v664
    %v666 = vsel %vm38, %v658, %v663
    %v667 = vsel %vm42, %v664, %v657
    %v668 = vsel %vm43, %v663, %v658
    %669 = vrot.lane.b32.xlu0 %v665, 112
    %v670 = vpop.permute.xlu0 %669
    %671 = vrot.lane.b32.xlu0 %v666, 112
    %v672 = vpop.permute.xlu0 %671
    %v673 = vsel %vm78, %v670, %v672
    %v674 = vsel %vm78, %v672, %v670
    %675 = vrot.lane.b32.xlu0 %v665, 16
    %v676 = vpop.permute.xlu0 %675
    %677 = vrot.lane.b32.xlu0 %v666, 16
    %v678 = vpop.permute.xlu0 %677
    %v679 = vsel %vm85, %v676, %v678
    %v680 = vsel %vm85, %v678, %v676
    %v681 = vsel %vm47, %v673, %v680
    %v682 = vsel %vm48, %v674, %v679
    %683 = vrot.lane.b32.xlu0 %v651, 112
    %v684 = vpop.permute.xlu0 %683
    %685 = vrot.lane.b32.xlu0 %v652, 112
    %v686 = vpop.permute.xlu0 %685
    %v687 = vsel %vm78, %v684, %v686
    %v688 = vsel %vm78, %v686, %v684
    %689 = vrot.lane.b32.xlu0 %v651, 16
    %v690 = vpop.permute.xlu0 %689
    %691 = vrot.lane.b32.xlu0 %v652, 16
    %v692 = vpop.permute.xlu0 %691
    %v693 = vsel %vm85, %v690, %v692
    %v694 = vsel %vm85, %v692, %v690
    %v695 = vsel %vm47, %v687, %v694
    %v696 = vsel %vm48, %v688, %v693
    %697 = vrot.lane.b32.xlu0 %v667, 112
    %v698 = vpop.permute.xlu0 %697
    %699 = vrot.lane.b32.xlu0 %v668, 112
    %v700 = vpop.permute.xlu0 %699
    %v701 = vsel %vm78, %v698, %v700
    %v702 = vsel %vm78, %v700, %v698
    %703 = vrot.lane.b32.xlu0 %v667, 16
    %v704 = vpop.permute.xlu0 %703
    %705 = vrot.lane.b32.xlu0 %v668, 16
    %v706 = vpop.permute.xlu0 %705
    %v707 = vsel %vm85, %v704, %v706
    %v708 = vsel %vm85, %v706, %v704
    %v709 = vsel %vm47, %v701, %v708
    %v710 = vsel %vm48, %v702, %v707
    %v711 = vsel %vm52, %v680, %v673
    %v712 = vsel %vm53, %v679, %v674
    %v713 = vsel %vm52, %v694, %v687
    %v714 = vsel %vm53, %v693, %v688
    %v715 = vsel %vm52, %v708, %v701
    %v716 = vsel %vm53, %v707, %v702
    %v717 = vld [vmem:[%s6] sm:$0xff]
    %719 = vset.pattern.permute.xlu0 0
    %720 = vperm.xlu0 %719, %v717
    %v721 = vpop.permute.xlu0 %720
    %v723 = vmul.f32 %v721, %v681
    %v724 = vmul.f32 %v721, %v682
    %s725 = scalar_lea.vmem %s6, 8
    %v726 = vld [vmem:[%s725] sm:$0xff]
    %728 = vset.pattern.permute.xlu0 0
    %729 = vperm.xlu0 %728, %v726
    %v730 = vpop.permute.xlu0 %729
    %v732 = vmul.f32 %v730, %v695
    %v733 = vmul.f32 %v730, %v696
    %v734 = vadd.f32 %v723, %v732
    %v735 = vadd.f32 %v724, %v733
    %s736 = scalar_lea.vmem %s6, 16
    %v737 = vld [vmem:[%s736] sm:$0xff]
    %739 = vset.pattern.permute.xlu0 0
    %740 = vperm.xlu0 %739, %v737
    %v741 = vpop.permute.xlu0 %740
    %v743 = vmul.f32 %v741, %v709
    %v744 = vmul.f32 %v741, %v710
    %v745 = vadd.f32 %v734, %v743
    %v746 = vadd.f32 %v735, %v744
    %s747 = scalar_lea.vmem %s6, 24
    %v748 = vld [vmem:[%s747] sm:$0xff]
    %750 = vset.pattern.permute.xlu0 0
    %751 = vperm.xlu0 %750, %v748
    %v752 = vpop.permute.xlu0 %751
    %v754 = vmul.f32 %v752, %v665
    %v755 = vmul.f32 %v752, %v666
    %v756 = vadd.f32 %v745, %v754
    %v757 = vadd.f32 %v746, %v755
    %s758 = scalar_lea.vmem %s6, 32
    %v759 = vld [vmem:[%s758] sm:$0xff]
    %761 = vset.pattern.permute.xlu0 0
    %762 = vperm.xlu0 %761, %v759
    %v763 = vpop.permute.xlu0 %762
    %v765 = vmul.f32 %v763, %v651
    %v766 = vmul.f32 %v763, %v652
    %v767 = vadd.f32 %v756, %v765
    %v768 = vadd.f32 %v757, %v766
    %s769 = scalar_lea.vmem %s6, 40
    %v770 = vld [vmem:[%s769] sm:$0xff]
    %772 = vset.pattern.permute.xlu0 0
    %773 = vperm.xlu0 %772, %v770
    %v774 = vpop.permute.xlu0 %773
    %v776 = vmul.f32 %v774, %v667
    %v777 = vmul.f32 %v774, %v668
    %v778 = vadd.f32 %v767, %v776
    %v779 = vadd.f32 %v768, %v777
    %s780 = scalar_lea.vmem %s6, 48
    %v781 = vld [vmem:[%s780] sm:$0xff]
    %783 = vset.pattern.permute.xlu0 0
    %784 = vperm.xlu0 %783, %v781
    %v785 = vpop.permute.xlu0 %784
    %v787 = vmul.f32 %v785, %v711
    %v788 = vmul.f32 %v785, %v712
    %v789 = vadd.f32 %v778, %v787
    %v790 = vadd.f32 %v779, %v788
    %s791 = scalar_lea.vmem %s6, 56
    %v792 = vld [vmem:[%s791] sm:$0xff]
    %794 = vset.pattern.permute.xlu0 0
    %795 = vperm.xlu0 %794, %v792
    %v796 = vpop.permute.xlu0 %795
    %v798 = vmul.f32 %v796, %v713
    %v799 = vmul.f32 %v796, %v714
    %v800 = vadd.f32 %v789, %v798
    %v801 = vadd.f32 %v790, %v799
    %s802 = scalar_lea.vmem %s6, 64
    %v803 = vld [vmem:[%s802] sm:$0xff]
    %805 = vset.pattern.permute.xlu0 0
    %806 = vperm.xlu0 %805, %v803
    %v807 = vpop.permute.xlu0 %806
    %v809 = vmul.f32 %v807, %v715
    %v810 = vmul.f32 %v807, %v716
    %v811 = vadd.f32 %v800, %v809
    %v812 = vadd.f32 %v801, %v810
    %v813 = vrot.slane %v811, 1
    %v814 = vrot.slane %v812, 1
    %v815 = vadd.f32 %v811, %v813
    %v816 = vadd.f32 %v812, %v814
    %v817 = vrot.slane %v811, 2
    %v818 = vrot.slane %v812, 2
    %v819 = vadd.f32 %v815, %v817
    %v820 = vadd.f32 %v816, %v818
    %v821 = vrot.slane %v811, 3
    %v822 = vrot.slane %v812, 3
    %v823 = vadd.f32 %v819, %v821
    %v824 = vadd.f32 %v820, %v822
    %v825 = vmul.f32 %v236, %v823
    %v826 = vmul.f32 %v236, %v824
    %v827 = vadd.f32 %v825, 0.0
    %v828 = vadd.f32 %v826, 0.0
    %s829 = scalar_lea.vmem %s6, 72
    %v830 = vld [vmem:[%s829] sm:$0xff]
    %832 = vset.pattern.permute.xlu0 0
    %833 = vperm.xlu0 %832, %v830
    %v834 = vpop.permute.xlu0 %833
    %v836 = vmul.f32 %v834, %v681
    %v837 = vmul.f32 %v834, %v682
    %s838 = scalar_lea.vmem %s6, 80
    %v839 = vld [vmem:[%s838] sm:$0xff]
    %841 = vset.pattern.permute.xlu0 0
    %842 = vperm.xlu0 %841, %v839
    %v843 = vpop.permute.xlu0 %842
    %v845 = vmul.f32 %v843, %v695
    %v846 = vmul.f32 %v843, %v696
    %v847 = vadd.f32 %v836, %v845
    %v848 = vadd.f32 %v837, %v846
    %s849 = scalar_lea.vmem %s6, 88
    %v850 = vld [vmem:[%s849] sm:$0xff]
    %852 = vset.pattern.permute.xlu0 0
    %853 = vperm.xlu0 %852, %v850
    %v854 = vpop.permute.xlu0 %853
    %v856 = vmul.f32 %v854, %v709
    %v857 = vmul.f32 %v854, %v710
    %v858 = vadd.f32 %v847, %v856
    %v859 = vadd.f32 %v848, %v857
    %s860 = scalar_lea.vmem %s6, 96
    %v861 = vld [vmem:[%s860] sm:$0xff]
    %863 = vset.pattern.permute.xlu0 0
    %864 = vperm.xlu0 %863, %v861
    %v865 = vpop.permute.xlu0 %864
    %v867 = vmul.f32 %v865, %v665
    %v868 = vmul.f32 %v865, %v666
    %v869 = vadd.f32 %v858, %v867
    %v870 = vadd.f32 %v859, %v868
    %s871 = scalar_lea.vmem %s6, 104
    %v872 = vld [vmem:[%s871] sm:$0xff]
    %874 = vset.pattern.permute.xlu0 0
    %875 = vperm.xlu0 %874, %v872
    %v876 = vpop.permute.xlu0 %875
    %v878 = vmul.f32 %v876, %v651
    %v879 = vmul.f32 %v876, %v652
    %v880 = vadd.f32 %v869, %v878
    %v881 = vadd.f32 %v870, %v879
    %s882 = scalar_lea.vmem %s6, 112
    %v883 = vld [vmem:[%s882] sm:$0xff]
    %885 = vset.pattern.permute.xlu0 0
    %886 = vperm.xlu0 %885, %v883
    %v887 = vpop.permute.xlu0 %886
    %v889 = vmul.f32 %v887, %v667
    %v890 = vmul.f32 %v887, %v668
    %v891 = vadd.f32 %v880, %v889
    %v892 = vadd.f32 %v881, %v890
    %s893 = scalar_lea.vmem %s6, 120
    %v894 = vld [vmem:[%s893] sm:$0xff]
    %896 = vset.pattern.permute.xlu0 0
    %897 = vperm.xlu0 %896, %v894
    %v898 = vpop.permute.xlu0 %897
    %v900 = vmul.f32 %v898, %v711
    %v901 = vmul.f32 %v898, %v712
    %v902 = vadd.f32 %v891, %v900
    %v903 = vadd.f32 %v892, %v901
    %s904 = scalar_lea.vmem %s6, 128
    %v905 = vld [vmem:[%s904] sm:$0xff]
    %907 = vset.pattern.permute.xlu0 0
    %908 = vperm.xlu0 %907, %v905
    %v909 = vpop.permute.xlu0 %908
    %v911 = vmul.f32 %v909, %v713
    %v912 = vmul.f32 %v909, %v714
    %v913 = vadd.f32 %v902, %v911
    %v914 = vadd.f32 %v903, %v912
    %s915 = scalar_lea.vmem %s6, 136
    %v916 = vld [vmem:[%s915] sm:$0xff]
    %918 = vset.pattern.permute.xlu0 0
    %919 = vperm.xlu0 %918, %v916
    %v920 = vpop.permute.xlu0 %919
    %v922 = vmul.f32 %v920, %v715
    %v923 = vmul.f32 %v920, %v716
    %v924 = vadd.f32 %v913, %v922
    %v925 = vadd.f32 %v914, %v923
    %v926 = vrot.slane %v924, 7
    %v927 = vrot.slane %v925, 7
    %v928 = vadd.f32 %v926, %v924
    %v929 = vadd.f32 %v927, %v925
    %v930 = vrot.slane %v924, 1
    %v931 = vrot.slane %v925, 1
    %v932 = vadd.f32 %v928, %v930
    %v933 = vadd.f32 %v929, %v931
    %v934 = vrot.slane %v924, 2
    %v935 = vrot.slane %v925, 2
    %v936 = vadd.f32 %v932, %v934
    %v937 = vadd.f32 %v933, %v935
    %v938 = vmul.f32 %v356, %v936
    %v939 = vmul.f32 %v356, %v937
    %v940 = vadd.f32 %v827, %v938
    %v941 = vadd.f32 %v828, %v939
    %s942 = scalar_lea.vmem %s6, 144
    %v943 = vld [vmem:[%s942] sm:$0xff]
    %945 = vset.pattern.permute.xlu0 0
    %946 = vperm.xlu0 %945, %v943
    %v947 = vpop.permute.xlu0 %946
    %v949 = vmul.f32 %v947, %v681
    %v950 = vmul.f32 %v947, %v682
    %s951 = scalar_lea.vmem %s6, 152
    %v952 = vld [vmem:[%s951] sm:$0xff]
    %954 = vset.pattern.permute.xlu0 0
    %955 = vperm.xlu0 %954, %v952
    %v956 = vpop.permute.xlu0 %955
    %v958 = vmul.f32 %v956, %v695
    %v959 = vmul.f32 %v956, %v696
    %v960 = vadd.f32 %v949, %v958
    %v961 = vadd.f32 %v950, %v959
    %s962 = scalar_lea.vmem %s6, 160
    %v963 = vld [vmem:[%s962] sm:$0xff]
    %965 = vset.pattern.permute.xlu0 0
    %966 = vperm.xlu0 %965, %v963
    %v967 = vpop.permute.xlu0 %966
    %v969 = vmul.f32 %v967, %v709
    %v970 = vmul.f32 %v967, %v710
    %v971 = vadd.f32 %v960, %v969
    %v972 = vadd.f32 %v961, %v970
    %s973 = scalar_lea.vmem %s6, 168
    %v974 = vld [vmem:[%s973] sm:$0xff]
    %976 = vset.pattern.permute.xlu0 0
    %977 = vperm.xlu0 %976, %v974
    %v978 = vpop.permute.xlu0 %977
    %v980 = vmul.f32 %v978, %v665
    %v981 = vmul.f32 %v978, %v666
    %v982 = vadd.f32 %v971, %v980
    %v983 = vadd.f32 %v972, %v981
    %s984 = scalar_lea.vmem %s6, 176
    %v985 = vld [vmem:[%s984] sm:$0xff]
    %987 = vset.pattern.permute.xlu0 0
    %988 = vperm.xlu0 %987, %v985
    %v989 = vpop.permute.xlu0 %988
    %v991 = vmul.f32 %v989, %v651
    %v992 = vmul.f32 %v989, %v652
    %v993 = vadd.f32 %v982, %v991
    %v994 = vadd.f32 %v983, %v992
    %s995 = scalar_lea.vmem %s6, 184
    %v996 = vld [vmem:[%s995] sm:$0xff]
    %998 = vset.pattern.permute.xlu0 0
    %999 = vperm.xlu0 %998, %v996
    %v1000 = vpop.permute.xlu0 %999
    %v1002 = vmul.f32 %v1000, %v667
    %v1003 = vmul.f32 %v1000, %v668
    %v1004 = vadd.f32 %v993, %v1002
    %v1005 = vadd.f32 %v994, %v1003
    %s1006 = scalar_lea.vmem %s6, 192
    %v1007 = vld [vmem:[%s1006] sm:$0xff]
    %1009 = vset.pattern.permute.xlu0 0
    %1010 = vperm.xlu0 %1009, %v1007
    %v1011 = vpop.permute.xlu0 %1010
    %v1013 = vmul.f32 %v1011, %v711
    %v1014 = vmul.f32 %v1011, %v712
    %v1015 = vadd.f32 %v1004, %v1013
    %v1016 = vadd.f32 %v1005, %v1014
    %s1017 = scalar_lea.vmem %s6, 200
    %v1018 = vld [vmem:[%s1017] sm:$0xff]
    %1020 = vset.pattern.permute.xlu0 0
    %1021 = vperm.xlu0 %1020, %v1018
    %v1022 = vpop.permute.xlu0 %1021
    %v1024 = vmul.f32 %v1022, %v713
    %v1025 = vmul.f32 %v1022, %v714
    %v1026 = vadd.f32 %v1015, %v1024
    %v1027 = vadd.f32 %v1016, %v1025
    %s1028 = scalar_lea.vmem %s6, 208
    %v1029 = vld [vmem:[%s1028] sm:$0xff]
    %1031 = vset.pattern.permute.xlu0 0
    %1032 = vperm.xlu0 %1031, %v1029
    %v1033 = vpop.permute.xlu0 %1032
    %v1035 = vmul.f32 %v1033, %v715
    %v1036 = vmul.f32 %v1033, %v716
    %v1037 = vadd.f32 %v1026, %v1035
    %v1038 = vadd.f32 %v1027, %v1036
    %v1039 = vrot.slane %v1037, 6
    %v1040 = vrot.slane %v1038, 6
    %v1041 = vrot.slane %v1037, 7
    %v1042 = vrot.slane %v1038, 7
    %v1043 = vadd.f32 %v1039, %v1041
    %v1044 = vadd.f32 %v1040, %v1042
    %v1045 = vadd.f32 %v1043, %v1037
    %v1046 = vadd.f32 %v1044, %v1038
    %v1047 = vrot.slane %v1037, 1
    %v1048 = vrot.slane %v1038, 1
    %v1049 = vadd.f32 %v1045, %v1047
    %v1050 = vadd.f32 %v1046, %v1048
    %v1051 = vmul.f32 %v476, %v1049
    %v1052 = vmul.f32 %v476, %v1050
    %v1053 = vadd.f32 %v940, %v1051
    %v1054 = vadd.f32 %v941, %v1052
    %s1055 = scalar_lea.vmem %s6, 216
    %v1056 = vld [vmem:[%s1055] sm:$0xff]
    %1058 = vset.pattern.permute.xlu0 0
    %1059 = vperm.xlu0 %1058, %v1056
    %v1060 = vpop.permute.xlu0 %1059
    %v1062 = vmul.f32 %v1060, %v681
    %v1063 = vmul.f32 %v1060, %v682
    %s1064 = scalar_lea.vmem %s6, 224
    %v1065 = vld [vmem:[%s1064] sm:$0xff]
    %1067 = vset.pattern.permute.xlu0 0
    %1068 = vperm.xlu0 %1067, %v1065
    %v1069 = vpop.permute.xlu0 %1068
    %v1071 = vmul.f32 %v1069, %v695
    %v1072 = vmul.f32 %v1069, %v696
    %v1073 = vadd.f32 %v1062, %v1071
    %v1074 = vadd.f32 %v1063, %v1072
    %s1075 = scalar_lea.vmem %s6, 232
    %v1076 = vld [vmem:[%s1075] sm:$0xff]
    %1078 = vset.pattern.permute.xlu0 0
    %1079 = vperm.xlu0 %1078, %v1076
    %v1080 = vpop.permute.xlu0 %1079
    %v1082 = vmul.f32 %v1080, %v709
    %v1083 = vmul.f32 %v1080, %v710
    %v1084 = vadd.f32 %v1073, %v1082
    %v1085 = vadd.f32 %v1074, %v1083
    %s1086 = scalar_lea.vmem %s6, 240
    %v1087 = vld [vmem:[%s1086] sm:$0xff]
    %1089 = vset.pattern.permute.xlu0 0
    %1090 = vperm.xlu0 %1089, %v1087
    %v1091 = vpop.permute.xlu0 %1090
    %v1093 = vmul.f32 %v1091, %v665
    %v1094 = vmul.f32 %v1091, %v666
    %v1095 = vadd.f32 %v1084, %v1093
    %v1096 = vadd.f32 %v1085, %v1094
    %s1097 = scalar_lea.vmem %s6, 248
    %v1098 = vld [vmem:[%s1097] sm:$0xff]
    %1100 = vset.pattern.permute.xlu0 0
    %1101 = vperm.xlu0 %1100, %v1098
    %v1102 = vpop.permute.xlu0 %1101
    %v1104 = vmul.f32 %v1102, %v651
    %v1105 = vmul.f32 %v1102, %v652
    %v1106 = vadd.f32 %v1095, %v1104
    %v1107 = vadd.f32 %v1096, %v1105
    %s1108 = scalar_lea.vmem %s6, 256
    %v1109 = vld [vmem:[%s1108] sm:$0xff]
    %1111 = vset.pattern.permute.xlu0 0
    %1112 = vperm.xlu0 %1111, %v1109
    %v1113 = vpop.permute.xlu0 %1112
    %v1115 = vmul.f32 %v1113, %v667
    %v1116 = vmul.f32 %v1113, %v668
    %v1117 = vadd.f32 %v1106, %v1115
    %v1118 = vadd.f32 %v1107, %v1116
    %s1119 = scalar_lea.vmem %s6, 264
    %v1120 = vld [vmem:[%s1119] sm:$0xff]
    %1122 = vset.pattern.permute.xlu0 0
    %1123 = vperm.xlu0 %1122, %v1120
    %v1124 = vpop.permute.xlu0 %1123
    %v1126 = vmul.f32 %v1124, %v711
    %v1127 = vmul.f32 %v1124, %v712
    %v1128 = vadd.f32 %v1117, %v1126
    %v1129 = vadd.f32 %v1118, %v1127
    %s1130 = scalar_lea.vmem %s6, 272
    %v1131 = vld [vmem:[%s1130] sm:$0xff]
    %1133 = vset.pattern.permute.xlu0 0
    %1134 = vperm.xlu0 %1133, %v1131
    %v1135 = vpop.permute.xlu0 %1134
    %v1137 = vmul.f32 %v1135, %v713
    %v1138 = vmul.f32 %v1135, %v714
    %v1139 = vadd.f32 %v1128, %v1137
    %v1140 = vadd.f32 %v1129, %v1138
    %s1141 = scalar_lea.vmem %s6, 280
    %v1142 = vld [vmem:[%s1141] sm:$0xff]
    %1144 = vset.pattern.permute.xlu0 0
    %1145 = vperm.xlu0 %1144, %v1142
    %v1146 = vpop.permute.xlu0 %1145
    %v1148 = vmul.f32 %v1146, %v715
    %v1149 = vmul.f32 %v1146, %v716
    %v1150 = vadd.f32 %v1139, %v1148
    %v1151 = vadd.f32 %v1140, %v1149
    %v1152 = vrot.slane %v1150, 5
    %v1153 = vrot.slane %v1151, 5
    %v1154 = vrot.slane %v1150, 6
    %v1155 = vrot.slane %v1151, 6
    %v1156 = vadd.f32 %v1152, %v1154
    %v1157 = vadd.f32 %v1153, %v1155
    %v1158 = vrot.slane %v1150, 7
    %v1159 = vrot.slane %v1151, 7
    %v1160 = vadd.f32 %v1156, %v1158
    %v1161 = vadd.f32 %v1157, %v1159
    %v1162 = vadd.f32 %v1160, %v1150
    %v1163 = vadd.f32 %v1161, %v1151
    %v1164 = vmul.f32 %v596, %v1162
    %v1165 = vmul.f32 %v596, %v1163
    %v1166 = vadd.f32 %v1053, %v1164
    %v1167 = vadd.f32 %v1054, %v1165
    %v1168 = vadd.f32 %v1166, %v1167
    %1169 = vadd.xlane.f32.xlu0 %v1168
    %v1170 = vpop.xlane.xlu0 %1169
    %v1171 = vrot.slane %v1170, 4
    %v1172 = vadd.f32 %v1170, %v1171
    %v1173 = vmul.f32 %v1172, 0.001953125
    %1175 = vset.pattern.permute.xlu0 0
    %1176 = vperm.xlu0 %1175, %v1173
    %v1177 = vpop.permute.xlu0 %1176
    %v1179 = vsub.f32 %v1166, %v1177
    %v1180 = vsub.f32 %v1167, %v1177
    %v1181 = vmul.f32 %v1179, %v1179
    %v1182 = vmul.f32 %v1180, %v1180
    %v1183 = vadd.f32 %v1181, %v1182
    %1184 = vadd.xlane.f32.xlu0 %v1183
    %v1185 = vpop.xlane.xlu0 %1184
    %v1186 = vrot.slane %v1185, 4
    %v1187 = vadd.f32 %v1185, %v1186
    %v1188 = vmul.f32 %v1187, 0.001953125
    %v1189 = vadd.f32 %v1188, 1e-05
    %v1190 = vrsqrt.pop %v1189
    %v1191 = vmul.f32 %v1190, %v1189
    %v1192 = vmul.f32 %v1191, %v1190
    %v1193 = vmul.f32 0.5, %v1192
    %v1194 = vsub.f32 1.5, %v1193
    %v1195 = vmul.f32 %v1190, %v1194
    %vm1196 = vweird.f32 %v1189
    %vm1197 = vweird.f32 %v1190
    %vm1198 = vmor %vm1196, %vm1197
    %v1199 = vsel %vm1198, %v1190, %v1195
    %v1200 = vld [vmem:[%s7] sm:$0xff]
    %v1201 = vmul.f32 %v1199, %v1200
    %1203 = vset.pattern.permute.xlu0 0
    %1204 = vperm.xlu0 %1203, %v1201
    %v1205 = vpop.permute.xlu0 %1204
    %v1207 = vmul.f32 %v1179, %v1205
    %v1208 = vmul.f32 %v1180, %v1205
    %v1209 = vld [vmem:[%s8] sm:$0xff]
    %1211 = vset.pattern.permute.xlu0 0
    %1212 = vperm.xlu0 %1211, %v1209
    %v1213 = vpop.permute.xlu0 %1212
    %v1215 = vadd.f32 %v1207, %v1213
    %v1216 = vadd.f32 %v1208, %v1213
    %v1217 = vadd.f32 %v1215, %v33
    %v1218 = vadd.f32 %v1216, %v34
    %v1219 = vmax.f32 %v1217, 0.0
    %v1220 = vmax.f32 %v1218, 0.0
    %1221 = vst [vmem:[#allocation2] sm:$0xff] %v1219
    %1222 = vst [vmem:[#allocation2 + $0x8] sm:$0xff] %v1220
    // Predicated region
    $region38: #{tpu_custom_call.1} parent=1 // pred_check
      _
    $region39: #{tpu_custom_call.1} parent=1 // pred_check_branch
      %1224 = sbr.rel (0) target = $region41
    $region40: #{tpu_custom_call.1} parent=1 // pred_region
      %1226 = vsyncadd [#allocation3], 0
      %s1228 = sshll.u32 [#allocation2], 4
      %s1229 = int_to_ptr.vmem [resolvable:$true] %s1228
      %s1230 = sshll.u32 %s9, 4
      %s1231 = int_to_ptr.hbm [resolvable:$true] %s1230
      %1233 = dma.vmem_to_hbm [thread:$0]  %s1229, 256, %s1231, [#allocation3]
    $region41: #{tpu_custom_call.1} parent=1 // pred_fallthru
      _
    // Predicated region
    $region42: #{tpu_custom_call.1} parent=1 // pred_check
      _
    $region43: #{tpu_custom_call.1} parent=1 // pred_check_branch
      %1235 = sbr.rel (0) target = $region45
    $region44: #{tpu_custom_call.1} parent=1 // pred_region
      %1237 = dma.done [#allocation3], 256
    $region45: #{tpu_custom_call.1} parent=1 // pred_fallthru
      _
    %1238 = vsyncpa [#allocation3], 1

</llo_original>
